<compile_context>
chip_gen: v5e
topology: v5e:2x2
jax: 0.10.0
libtpu: 0.0.40
codegen_flags: <defaults>
</compile_context>

<pallas_src>
import functools
import math

import jax
import jax.numpy as jnp
from jax.experimental import pallas as pl
from jax.experimental.pallas import tpu as pltpu


def _mm_t(a, w):
    """a: (M, K), w: (N, K) -> a @ w.T, accumulated in f32 on the MXU."""
    return jax.lax.dot_general(
        a, w, (((1,), (1,)), ((), ())), preferred_element_type=jnp.float32
    )


def _layernorm(x, w, b, eps=1e-5):
    mu = jnp.mean(x, axis=-1, keepdims=True)
    var = jnp.mean((x - mu) ** 2, axis=-1, keepdims=True)
    return (x - mu) * jax.lax.rsqrt(var + eps) * w + b


def encoder_kernel(
    x_ref, wexpr_ref, bexpr_ref, gemb_ref,
    wqkv_ref, bqkv_ref, wout_ref,
    wff1_ref, bff1_ref, wff2_ref, vecs_ref,
    out_ref, h_ref, *, n_heads,
):
    l = pl.program_id(1)
    n_layers = pl.num_programs(1)
    S, D = gemb_ref.shape
    Bt = x_ref.shape[0]
    N = Bt * S
    H = n_heads
    dh = D // H
    scale = 1.0 / math.sqrt(dh)
    cdt = wqkv_ref.dtype                     # MXU compute dtype (bf16 or f32)
    approx_recip = jnp.dtype(cdt) != jnp.dtype(jnp.float32)

    # ---- first layer step for this batch tile: build the embedded input ----
    # expr_proj(x.unsqueeze(-1)) is a K=1 contraction -> pure VPU broadcast mul.
    @pl.when(l == 0)
    def _init():
        x = x_ref[...].reshape(Bt, S).astype(jnp.float32)        # lane-dense
        h0 = (x[:, :, None] * wexpr_ref[...] + bexpr_ref[...]
              + gemb_ref[...].astype(jnp.float32))
        h_ref[...] = h0.reshape(N, D)

    h = h_ref[...]                                               # (N, D) f32 residual
    hc = h.astype(cdt)

    # small per-layer vectors, packed into one streamed block (sublane rows)
    vecs = vecs_ref[0]                                           # (6, D) f32
    b_out, b_ff2 = vecs[0:1], vecs[1:2]
    ln1w, ln1b = vecs[2:3], vecs[3:4]
    ln2w, ln2b = vecs[4:5], vecs[5:6]

    # ---- multi-head self-attention (post-norm block) ----
    # One fused QKV matmul (full D-wide MXU output), then per-head views only
    # for the SxS score / softmax / PV core; heads are concatenated and fed to
    # a single D-deep output projection.
    qkv = _mm_t(hc, wqkv_ref[0]) + bqkv_ref[0]                   # (N, 3D) f32
    o_heads = []
    for hd in range(H):                                          # H is small & static
        lo = hd * dh
        qh = qkv[:, lo:lo + dh].reshape(Bt, S, dh).astype(cdt)
        kh = qkv[:, D + lo:D + lo + dh].reshape(Bt, S, dh).astype(cdt)
        vh = qkv[:, 2 * D + lo:2 * D + lo + dh].reshape(Bt, S, dh).astype(cdt)
        s = jax.lax.dot_general(                                 # (Bt, S, S) f32
            qh, kh, (((2,), (2,)), ((0,), (0,))),
            preferred_element_type=jnp.float32,
        ) * scale
        s = s - jnp.max(s, axis=-1, keepdims=True)
        p = jnp.exp(s)
        p = p * pl.reciprocal(jnp.sum(p, axis=-1, keepdims=True),
                              approx=approx_recip)
        oh = jax.lax.dot_general(                                # (Bt, S, dh) f32
            p.astype(cdt), vh, (((2,), (1,)), ((0,), (0,))),
            preferred_element_type=jnp.float32,
        )
        o_heads.append(oh.reshape(N, dh))
    o_cat = jnp.concatenate(o_heads, axis=-1)                    # (N, D)
    sa = _mm_t(o_cat.astype(cdt), wout_ref[0]) + b_out           # single D-deep matmul
    # TODO(synk): dropout(p=0.1) has no deterministic Pallas equivalent; eval mode (identity).
    h = _layernorm(h + sa, ln1w, ln1b)

    # ---- feed forward ----
    ff = jnp.maximum(_mm_t(h.astype(cdt), wff1_ref[0]) + bff1_ref[0], 0.0)
    ff = _mm_t(ff.astype(cdt), wff2_ref[0]) + b_ff2
    h = _layernorm(h + ff, ln2w, ln2b)
    h_ref[...] = h

    # ---- mean over the gene/sequence axis at the last layer ----
    @pl.when(l == n_layers - 1)
    def _finalize():
        out_ref[...] = (h.reshape(Bt, S, D).sum(axis=1, keepdims=True)
                        * (1.0 / S)).astype(out_ref.dtype)


# ----------------------------- sizing helpers ------------------------------

def _vmem_cap_bytes():
    """Per-core VMEM budget: physical capacity with ~1/8 headroom for Mosaic
    internal scratch / pipeline buffers. Conservative 64 MiB (v7x) fallback."""
    try:
        phys = int(pltpu.get_tpu_info().vmem_capacity_bytes)
    except Exception:
        phys = 64 * 2**20
    return (phys * 7) // 8


def _footprint_bytes(Bt, S, D, csize):
    """Rough VMEM footprint for one batch tile (streamed weights double-buffered)."""
    N = Bt * S
    per_layer = 2 * (12 * D * D * csize + 16 * D * 4)    # w_qkv,w_out,w_ff1,w_ff2 + biases
    consts = S * D * csize + 4 * D * 4                   # gene_embedding + expr_proj
    io = 2 * (Bt * S + Bt * D) * 4
    h_scratch = N * D * 4
    acts = N * 12 * D * 4 + Bt * S * S * 8 + N * 8 * D * csize
    return per_layer + consts + io + h_scratch + acts


def _pick_batch_tile(B, S, D, csize, cap):
    """Largest divisor of B that fits the VMEM cap; prefer >=2 programs on the
    batch axis (v7x megacore) unless that would drop Bt*S below the
    weight-streaming roofline (~256) that the full-batch tile met."""
    divisors = sorted((d for d in range(1, B + 1) if B % d == 0), reverse=True)
    best = None
    for Bt in divisors:
        if _footprint_bytes(Bt, S, D, csize) > cap:
            continue
        if best is None:
            best = Bt
        if B // Bt >= 2 and (Bt * S >= 256 or best * S < 256):
            return Bt
    return best if best is not None else 1


# -------------------------------- wrapper ----------------------------------

def attention_encoder_forward(
    x, params, n_heads, *, batch_tile=None, compute_dtype=jnp.bfloat16
):
    B, S = x.shape
    D = params["gene_embedding"].shape[1]
    L = params["w_in"].shape[0]
    H = n_heads
    assert D % H == 0

    f32 = jnp.float32
    cdt = compute_dtype
    csize = jnp.dtype(cdt).itemsize

    cap = _vmem_cap_bytes()
    Bt = _pick_batch_tile(B, S, D, csize, cap) if batch_tile is None else batch_tile
    assert B % Bt == 0
    vmem_limit = int(min(cap, max(32 * 2**20, 2 * _footprint_bytes(Bt, S, D, csize))))

    # Host-side repack: fused QKV / out-proj weights, packed per-layer vectors.
    w_qkv = params["w_in"].astype(cdt)                              # (L, 3D, D)
    b_qkv = params["b_in"].reshape(L, 1, 3 * D).astype(f32)         # (L, 1, 3D)
    w_out = params["w_out"].astype(cdt)                             # (L, D, D)
    w_ff1 = params["w_ff1"].astype(cdt)                             # (L, 4D, D)
    b_ff1 = params["b_ff1"].reshape(L, 1, 4 * D).astype(f32)        # (L, 1, 4D)
    w_ff2 = params["w_ff2"].astype(cdt)                             # (L, D, 4D)
    vecs = jnp.stack(                                               # (L, 6, D)
        [params["b_out"], params["b_ff2"],
         params["ln1_w"], params["ln1_b"],
         params["ln2_w"], params["ln2_b"]], axis=1).astype(f32)
    w_expr = params["w_expr"].astype(f32)                           # (1, D)
    b_expr = params["b_expr"].astype(f32)                           # (1, D)
    gemb = params["gene_embedding"].astype(cdt)                     # (S, D), compute dtype
    x3 = x.reshape(B, 1, S).astype(f32)                             # lane-dense, Bt-safe block

    def const(arr):   # grid-invariant operand: fetched once, kept resident
        n = arr.ndim
        return pl.BlockSpec(arr.shape, lambda b, l: (0,) * n)

    def per_layer(arr):   # streamed one layer per grid step along axis 1
        n = arr.ndim
        return pl.BlockSpec((1,) + arr.shape[1:],
                            lambda b, l: (l,) + (0,) * (n - 1))

    kern = functools.partial(encoder_kernel, n_heads=H)
    out = pl.pallas_call(
        kern,
        out_shape=jax.ShapeDtypeStruct((B, 1, D), jnp.float32),
        grid_spec=pltpu.PrefetchScalarGridSpec(
            num_scalar_prefetch=0,
            grid=(B // Bt, L),
            in_specs=[
                pl.BlockSpec((Bt, 1, S), lambda b, l: (b, 0, 0)),   # x
                const(w_expr), const(b_expr), const(gemb),
                per_layer(w_qkv), per_layer(b_qkv), per_layer(w_out),
                per_layer(w_ff1), per_layer(b_ff1), per_layer(w_ff2),
                per_layer(vecs),
            ],
            out_specs=pl.BlockSpec((Bt, 1, D), lambda b, l: (b, 0, 0)),
            scratch_shapes=[pltpu.VMEM((Bt * S, D), jnp.float32)],
        ),
        compiler_params=pltpu.CompilerParams(
            dimension_semantics=("parallel", "arbitrary"),
            vmem_limit_bytes=vmem_limit,
        ),
    )(x3, w_expr, b_expr, gemb,
      w_qkv, b_qkv, w_out, w_ff1, b_ff1, w_ff2, vecs)
    return out.reshape(B, D)


# ------------------------------- reference ---------------------------------

def reference_forward(x, params, n_heads):
    """Pure-JAX f32 reference mirroring the PyTorch module (eval mode)."""
    B, S = x.shape
    D = params["gene_embedding"].shape[1]
    L = params["w_in"].shape[0]
    dh = D // n_heads
    h = x[:, :, None] @ params["w_expr"] + params["b_expr"]
    h = h + params["gene_embedding"][None]
    for l in range(L):
        qkv = h @ params["w_in"][l].T + params["b_in"][l]
        q, k, v = jnp.split(qkv, 3, axis=-1)
        q = q.reshape(B, S, n_heads, dh).transpose(0, 2, 1, 3)
        k = k.reshape(B, S, n_heads, dh).transpose(0, 2, 1, 3)
        v = v.reshape(B, S, n_heads, dh).transpose(0, 2, 1, 3)
        s = (q @ k.transpose(0, 1, 3, 2)) / math.sqrt(dh)
        p = jax.nn.softmax(s, axis=-1)
        o = (p @ v).transpose(0, 2, 1, 3).reshape(B, S, D)
        sa = o @ params["w_out"][l].T + params["b_out"][l]
        h = _layernorm(h + sa, params["ln1_w"][l], params["ln1_b"][l])
        ff = jax.nn.relu(h @ params["w_ff1"][l].T + params["b_ff1"][l])
        ff = ff @ params["w_ff2"][l].T + params["b_ff2"][l]
        h = _layernorm(h + ff, params["ln2_w"][l], params["ln2_b"][l])
    return h.mean(axis=1)


def init_params(key, n_genes, d_model, n_layers):
    D, L, S = d_model, n_layers, n_genes
    ks = jax.random.split(key, 10)
    scale = 0.05
    return {
        "w_expr": scale * jax.random.normal(ks[0], (1, D), jnp.float32),
        "b_expr": scale * jax.random.normal(ks[1], (1, D), jnp.float32),
        "gene_embedding": jax.random.normal(ks[2], (S, D), jnp.float32),
        "w_in": scale * jax.random.normal(ks[3], (L, 3 * D, D), jnp.float32),
        "b_in": scale * jax.random.normal(ks[4], (L, 3 * D), jnp.float32),
        "w_out": scale * jax.random.normal(ks[5], (L, D, D), jnp.float32),
        "b_out": scale * jax.random.normal(ks[6], (L, D), jnp.float32),
        "w_ff1": scale * jax.random.normal(ks[7], (L, 4 * D, D), jnp.float32),
        "b_ff1": jnp.zeros((L, 4 * D), jnp.float32),
        "w_ff2": scale * jax.random.normal(ks[8], (L, D, 4 * D), jnp.float32),
        "b_ff2": jnp.zeros((L, D), jnp.float32),
        "ln1_w": jnp.ones((L, D), jnp.float32),
        "ln1_b": jnp.zeros((L, D), jnp.float32),
        "ln2_w": jnp.ones((L, D), jnp.float32),
        "ln2_b": jnp.zeros((L, D), jnp.float32),
    }


if __name__ == "__main__":
    B, n_genes, d_model, n_heads, n_layers = 2, 8, 32, 4, 2
    key = jax.random.PRNGKey(0)
    kx, kp = jax.random.split(key)
    x = jax.random.normal(kx, (B, n_genes), jnp.float32)  # expression matrix
    params = init_params(kp, n_genes, d_model, n_layers)

    ref = reference_forward(x, params, n_heads)

    # f32 path: tight correctness check of the kernel structure.
    out_f32 = jax.block_until_ready(
        attention_encoder_forward(x, params, n_heads, compute_dtype=jnp.float32))
    assert out_f32.shape == (B, d_model)
    assert jnp.allclose(out_f32, ref, atol=1e-3, rtol=1e-3), (
        f"f32 max abs err {jnp.max(jnp.abs(out_f32 - ref))}"
    )

    # bf16 fast path (MXU-friendly): looser tolerance vs the f32 reference
    # (bf16 weights + gene_embedding + approx EUP reciprocal in softmax).
    out_bf16 = jax.block_until_ready(
        attention_encoder_forward(x, params, n_heads, compute_dtype=jnp.bfloat16))
    assert out_bf16.shape == (B, d_model)
    assert jnp.allclose(out_bf16, ref, atol=5e-2, rtol=5e-2), (
        f"bf16 max abs err {jnp.max(jnp.abs(out_bf16 - ref))}"
    )

    print("KERNEL_OK")
</pallas_src>

<mosaic_0001>
module attributes {stable_mosaic.version = 11 : i64} {
  func.func @encoder_kernel(%arg0: i32, %arg1: i32, %arg2: memref<1x1x8xf32, #tpu.memory_space<vmem>>, %arg3: memref<1x32xf32, #tpu.memory_space<vmem>>, %arg4: memref<1x32xf32, #tpu.memory_space<vmem>>, %arg5: memref<8x32xf32, #tpu.memory_space<vmem>>, %arg6: memref<1x96x32xf32, #tpu.memory_space<vmem>>, %arg7: memref<1x1x96xf32, #tpu.memory_space<vmem>>, %arg8: memref<1x32x32xf32, #tpu.memory_space<vmem>>, %arg9: memref<1x128x32xf32, #tpu.memory_space<vmem>>, %arg10: memref<1x1x128xf32, #tpu.memory_space<vmem>>, %arg11: memref<1x32x128xf32, #tpu.memory_space<vmem>>, %arg12: memref<1x6x32xf32, #tpu.memory_space<vmem>>, %arg13: memref<1x1x32xf32, #tpu.memory_space<vmem>>, %arg14: memref<8x32xf32, #tpu.memory_space<vmem>>) attributes {dimension_semantics = [#tpu.dimension_semantics<parallel>, #tpu.dimension_semantics<arbitrary>], iteration_bounds = array<i64: 2, 2>, scalar_prefetch = 0 : i64, scratch_operands = 1 : i64, tpu.core_type = #tpu.core_type<tc>, window_params = [{transform_indices = @transform_0, window_bounds = array<i64: 1, 1, 8>}, {pipeline_mode = #tpu.pipeline_mode<synchronous>, transform_indices = @transform_1, window_bounds = array<i64: 1, 32>}, {pipeline_mode = #tpu.pipeline_mode<synchronous>, transform_indices = @transform_2, window_bounds = array<i64: 1, 32>}, {pipeline_mode = #tpu.pipeline_mode<synchronous>, transform_indices = @transform_3, window_bounds = array<i64: 8, 32>}, {transform_indices = @transform_4, window_bounds = array<i64: 1, 96, 32>}, {transform_indices = @transform_5, window_bounds = array<i64: 1, 1, 96>}, {transform_indices = @transform_6, window_bounds = array<i64: 1, 32, 32>}, {transform_indices = @transform_7, window_bounds = array<i64: 1, 128, 32>}, {transform_indices = @transform_8, window_bounds = array<i64: 1, 1, 128>}, {transform_indices = @transform_9, window_bounds = array<i64: 1, 32, 128>}, {transform_indices = @transform_10, window_bounds = array<i64: 1, 6, 32>}, {transform_indices = @transform_11, window_bounds = array<i64: 1, 1, 32>}]} {
    %c0_i32 = arith.constant 0 : i32
    %0 = arith.cmpi eq, %arg1, %c0_i32 : i32
    %1 = arith.extui %0 : i1 to i32
    %c0_i32_0 = arith.constant 0 : i32
    %2 = arith.cmpi ne, %1, %c0_i32_0 : i32
    scf.if %2 {
      %c0_60 = arith.constant 0 : index
      %c0_61 = arith.constant 0 : index
      %c0_62 = arith.constant 0 : index
      %173 = vector.load %arg2[%c0_60, %c0_61, %c0_62] : memref<1x1x8xf32, #tpu.memory_space<vmem>>, vector<1x1x8xf32>
      %174 = vector.shape_cast %173 : vector<1x1x8xf32> to vector<1x8xf32>
      %175 = vector.shape_cast %174 : vector<1x8xf32> to vector<1x8x1xf32>
      %c0_63 = arith.constant 0 : index
      %c0_64 = arith.constant 0 : index
      %176 = vector.load %arg3[%c0_63, %c0_64] : memref<1x32xf32, #tpu.memory_space<vmem>>, vector<1x32xf32>
      %177 = vector.shape_cast %176 : vector<1x32xf32> to vector<1x1x32xf32>
      %178 = vector.broadcast %175 : vector<1x8x1xf32> to vector<1x8x32xf32>
      %179 = vector.broadcast %177 : vector<1x1x32xf32> to vector<1x8x32xf32>
      %180 = arith.mulf %178, %179 : vector<1x8x32xf32>
      %c0_65 = arith.constant 0 : index
      %c0_66 = arith.constant 0 : index
      %181 = vector.load %arg4[%c0_65, %c0_66] : memref<1x32xf32, #tpu.memory_space<vmem>>, vector<1x32xf32>
      %182 = vector.shape_cast %181 : vector<1x32xf32> to vector<1x1x32xf32>
      %183 = vector.broadcast %182 : vector<1x1x32xf32> to vector<1x8x32xf32>
      %184 = arith.addf %180, %183 : vector<1x8x32xf32>
      %c0_67 = arith.constant 0 : index
      %c0_68 = arith.constant 0 : index
      %185 = vector.load %arg5[%c0_67, %c0_68] : memref<8x32xf32, #tpu.memory_space<vmem>>, vector<8x32xf32>
      %186 = vector.shape_cast %185 : vector<8x32xf32> to vector<1x8x32xf32>
      %187 = arith.addf %184, %186 : vector<1x8x32xf32>
      %188 = vector.shape_cast %187 : vector<1x8x32xf32> to vector<8x32xf32>
      %c0_69 = arith.constant 0 : index
      %c0_70 = arith.constant 0 : index
      %189 = vector.load %arg14[%c0_69, %c0_70] : memref<8x32xf32, #tpu.memory_space<vmem>>, vector<8x32xf32>
      tpu.vector_store %arg14[%c0_69, %c0_70], %188 {strides = array<i32>} : memref<8x32xf32, #tpu.memory_space<vmem>>, vector<8x32xf32>,
    } else {
    }
    %c0 = arith.constant 0 : index
    %c0_1 = arith.constant 0 : index
    %3 = vector.load %arg14[%c0, %c0_1] : memref<8x32xf32, #tpu.memory_space<vmem>>, vector<8x32xf32>
    %c0_2 = arith.constant 0 : index
    %c0_3 = arith.constant 0 : index
    %c0_4 = arith.constant 0 : index
    %4 = vector.load %arg12[%c0_2, %c0_3, %c0_4] : memref<1x6x32xf32, #tpu.memory_space<vmem>>, vector<1x6x32xf32>
    %5 = vector.shape_cast %4 : vector<1x6x32xf32> to vector<6x32xf32>
    %6 = vector.extract_strided_slice %5 {offsets = [0, 0], sizes = [1, 32], strides = [1, 1]} : vector<6x32xf32> to vector<1x32xf32>
    %7 = vector.extract_strided_slice %5 {offsets = [1, 0], sizes = [1, 32], strides = [1, 1]} : vector<6x32xf32> to vector<1x32xf32>
    %8 = vector.extract_strided_slice %5 {offsets = [2, 0], sizes = [1, 32], strides = [1, 1]} : vector<6x32xf32> to vector<1x32xf32>
    %9 = vector.extract_strided_slice %5 {offsets = [3, 0], sizes = [1, 32], strides = [1, 1]} : vector<6x32xf32> to vector<1x32xf32>
    %10 = vector.extract_strided_slice %5 {offsets = [4, 0], sizes = [1, 32], strides = [1, 1]} : vector<6x32xf32> to vector<1x32xf32>
    %11 = vector.extract_strided_slice %5 {offsets = [5, 0], sizes = [1, 32], strides = [1, 1]} : vector<6x32xf32> to vector<1x32xf32>
    %c0_5 = arith.constant 0 : index
    %c0_6 = arith.constant 0 : index
    %c0_7 = arith.constant 0 : index
    %12 = vector.load %arg6[%c0_5, %c0_6, %c0_7] : memref<1x96x32xf32, #tpu.memory_space<vmem>>, vector<1x96x32xf32>
    %13 = vector.shape_cast %12 : vector<1x96x32xf32> to vector<96x32xf32>
    %cst = arith.constant dense<0.000000e+00> : vector<8x96xf32>
    %14 = tpu.matmul %3, %13, %cst {dimension_numbers = #tpu.dot_dimension_numbers<[1], [1], [0], [0], [0, 0, 1, 0], [], []>} : vector<8x32xf32>, vector<96x32xf32>, vector<8x96xf32> -> vector<8x96xf32>
    %c0_8 = arith.constant 0 : index
    %c0_9 = arith.constant 0 : index
    %c0_10 = arith.constant 0 : index
    %15 = vector.load %arg7[%c0_8, %c0_9, %c0_10] : memref<1x1x96xf32, #tpu.memory_space<vmem>>, vector<1x1x96xf32>
    %16 = vector.shape_cast %15 : vector<1x1x96xf32> to vector<1x96xf32>
    %17 = vector.broadcast %16 : vector<1x96xf32> to vector<8x96xf32>
    %18 = arith.addf %14, %17 : vector<8x96xf32>
    %19 = vector.extract_strided_slice %18 {offsets = [0, 0], sizes = [8, 8], strides = [1, 1]} : vector<8x96xf32> to vector<8x8xf32>
    %20 = vector.shape_cast %19 : vector<8x8xf32> to vector<1x8x8xf32>
    %21 = vector.extract_strided_slice %18 {offsets = [0, 32], sizes = [8, 8], strides = [1, 1]} : vector<8x96xf32> to vector<8x8xf32>
    %22 = vector.shape_cast %21 : vector<8x8xf32> to vector<1x8x8xf32>
    %23 = vector.extract_strided_slice %18 {offsets = [0, 64], sizes = [8, 8], strides = [1, 1]} : vector<8x96xf32> to vector<8x8xf32>
    %24 = vector.shape_cast %23 : vector<8x8xf32> to vector<1x8x8xf32>
    %cst_11 = arith.constant dense<0.000000e+00> : vector<1x8x8xf32>
    %25 = tpu.matmul %20, %22, %cst_11 {dimension_numbers = #tpu.dot_dimension_numbers<[2], [2], [1], [1], [0, 0, 0, 1, 1, 1], [0], [0]>} : vector<1x8x8xf32>, vector<1x8x8xf32>, vector<1x8x8xf32> -> vector<1x8x8xf32>
    %cst_12 = arith.constant 0.353553385 : f32
    %26 = vector.broadcast %cst_12 : f32 to vector<1x8x8xf32>
    %27 = arith.mulf %25, %26 : vector<1x8x8xf32>
    %cst_13 = arith.constant dense<0xFF800000> : vector<1x8xf32>
    %28 = vector.multi_reduction <maximumf>, %27, %cst_13 [2] : vector<1x8x8xf32> to vector<1x8xf32>
    %29 = vector.shape_cast %28 : vector<1x8xf32> to vector<1x8x1xf32>
    %30 = vector.broadcast %29 : vector<1x8x1xf32> to vector<1x8x8xf32>
    %31 = arith.subf %27, %30 : vector<1x8x8xf32>
    %32 = math.exp %31 : vector<1x8x8xf32>
    %cst_14 = arith.constant dense<0.000000e+00> : vector<1x8xf32>
    %33 = vector.multi_reduction <add>, %32, %cst_14 [2] : vector<1x8x8xf32> to vector<1x8xf32>
    %34 = vector.shape_cast %33 : vector<1x8xf32> to vector<1x8x1xf32>
    %35 = tpu.reciprocal %34 : vector<1x8x1xf32> -> vector<1x8x1xf32>
    %36 = vector.broadcast %35 : vector<1x8x1xf32> to vector<1x8x8xf32>
    %37 = arith.mulf %32, %36 : vector<1x8x8xf32>
    %cst_15 = arith.constant dense<0.000000e+00> : vector<1x8x8xf32>
    %38 = tpu.matmul %37, %24, %cst_15 {dimension_numbers = #tpu.dot_dimension_numbers<[2], [1], [1], [2], [0, 0, 0, 1, 1, 2], [0], [0]>} : vector<1x8x8xf32>, vector<1x8x8xf32>, vector<1x8x8xf32> -> vector<1x8x8xf32>
    %39 = vector.shape_cast %38 : vector<1x8x8xf32> to vector<8x8xf32>
    %40 = vector.extract_strided_slice %18 {offsets = [0, 8], sizes = [8, 8], strides = [1, 1]} : vector<8x96xf32> to vector<8x8xf32>
    %41 = vector.shape_cast %40 : vector<8x8xf32> to vector<1x8x8xf32>
    %42 = vector.extract_strided_slice %18 {offsets = [0, 40], sizes = [8, 8], strides = [1, 1]} : vector<8x96xf32> to vector<8x8xf32>
    %43 = vector.shape_cast %42 : vector<8x8xf32> to vector<1x8x8xf32>
    %44 = vector.extract_strided_slice %18 {offsets = [0, 72], sizes = [8, 8], strides = [1, 1]} : vector<8x96xf32> to vector<8x8xf32>
    %45 = vector.shape_cast %44 : vector<8x8xf32> to vector<1x8x8xf32>
    %cst_16 = arith.constant dense<0.000000e+00> : vector<1x8x8xf32>
    %46 = tpu.matmul %41, %43, %cst_16 {dimension_numbers = #tpu.dot_dimension_numbers<[2], [2], [1], [1], [0, 0, 0, 1, 1, 1], [0], [0]>} : vector<1x8x8xf32>, vector<1x8x8xf32>, vector<1x8x8xf32> -> vector<1x8x8xf32>
    %cst_17 = arith.constant 0.353553385 : f32
    %47 = vector.broadcast %cst_17 : f32 to vector<1x8x8xf32>
    %48 = arith.mulf %46, %47 : vector<1x8x8xf32>
    %cst_18 = arith.constant dense<0xFF800000> : vector<1x8xf32>
    %49 = vector.multi_reduction <maximumf>, %48, %cst_18 [2] : vector<1x8x8xf32> to vector<1x8xf32>
    %50 = vector.shape_cast %49 : vector<1x8xf32> to vector<1x8x1xf32>
    %51 = vector.broadcast %50 : vector<1x8x1xf32> to vector<1x8x8xf32>
    %52 = arith.subf %48, %51 : vector<1x8x8xf32>
    %53 = math.exp %52 : vector<1x8x8xf32>
    %cst_19 = arith.constant dense<0.000000e+00> : vector<1x8xf32>
    %54 = vector.multi_reduction <add>, %53, %cst_19 [2] : vector<1x8x8xf32> to vector<1x8xf32>
    %55 = vector.shape_cast %54 : vector<1x8xf32> to vector<1x8x1xf32>
    %56 = tpu.reciprocal %55 : vector<1x8x1xf32> -> vector<1x8x1xf32>
    %57 = vector.broadcast %56 : vector<1x8x1xf32> to vector<1x8x8xf32>
    %58 = arith.mulf %53, %57 : vector<1x8x8xf32>
    %cst_20 = arith.constant dense<0.000000e+00> : vector<1x8x8xf32>
    %59 = tpu.matmul %58, %45, %cst_20 {dimension_numbers = #tpu.dot_dimension_numbers<[2], [1], [1], [2], [0, 0, 0, 1, 1, 2], [0], [0]>} : vector<1x8x8xf32>, vector<1x8x8xf32>, vector<1x8x8xf32> -> vector<1x8x8xf32>
    %60 = vector.shape_cast %59 : vector<1x8x8xf32> to vector<8x8xf32>
    %61 = vector.extract_strided_slice %18 {offsets = [0, 16], sizes = [8, 8], strides = [1, 1]} : vector<8x96xf32> to vector<8x8xf32>
    %62 = vector.shape_cast %61 : vector<8x8xf32> to vector<1x8x8xf32>
    %63 = vector.extract_strided_slice %18 {offsets = [0, 48], sizes = [8, 8], strides = [1, 1]} : vector<8x96xf32> to vector<8x8xf32>
    %64 = vector.shape_cast %63 : vector<8x8xf32> to vector<1x8x8xf32>
    %65 = vector.extract_strided_slice %18 {offsets = [0, 80], sizes = [8, 8], strides = [1, 1]} : vector<8x96xf32> to vector<8x8xf32>
    %66 = vector.shape_cast %65 : vector<8x8xf32> to vector<1x8x8xf32>
    %cst_21 = arith.constant dense<0.000000e+00> : vector<1x8x8xf32>
    %67 = tpu.matmul %62, %64, %cst_21 {dimension_numbers = #tpu.dot_dimension_numbers<[2], [2], [1], [1], [0, 0, 0, 1, 1, 1], [0], [0]>} : vector<1x8x8xf32>, vector<1x8x8xf32>, vector<1x8x8xf32> -> vector<1x8x8xf32>
    %cst_22 = arith.constant 0.353553385 : f32
    %68 = vector.broadcast %cst_22 : f32 to vector<1x8x8xf32>
    %69 = arith.mulf %67, %68 : vector<1x8x8xf32>
    %cst_23 = arith.constant dense<0xFF800000> : vector<1x8xf32>
    %70 = vector.multi_reduction <maximumf>, %69, %cst_23 [2] : vector<1x8x8xf32> to vector<1x8xf32>
    %71 = vector.shape_cast %70 : vector<1x8xf32> to vector<1x8x1xf32>
    %72 = vector.broadcast %71 : vector<1x8x1xf32> to vector<1x8x8xf32>
    %73 = arith.subf %69, %72 : vector<1x8x8xf32>
    %74 = math.exp %73 : vector<1x8x8xf32>
    %cst_24 = arith.constant dense<0.000000e+00> : vector<1x8xf32>
    %75 = vector.multi_reduction <add>, %74, %cst_24 [2] : vector<1x8x8xf32> to vector<1x8xf32>
    %76 = vector.shape_cast %75 : vector<1x8xf32> to vector<1x8x1xf32>
    %77 = tpu.reciprocal %76 : vector<1x8x1xf32> -> vector<1x8x1xf32>
    %78 = vector.broadcast %77 : vector<1x8x1xf32> to vector<1x8x8xf32>
    %79 = arith.mulf %74, %78 : vector<1x8x8xf32>
    %cst_25 = arith.constant dense<0.000000e+00> : vector<1x8x8xf32>
    %80 = tpu.matmul %79, %66, %cst_25 {dimension_numbers = #tpu.dot_dimension_numbers<[2], [1], [1], [2], [0, 0, 0, 1, 1, 2], [0], [0]>} : vector<1x8x8xf32>, vector<1x8x8xf32>, vector<1x8x8xf32> -> vector<1x8x8xf32>
    %81 = vector.shape_cast %80 : vector<1x8x8xf32> to vector<8x8xf32>
    %82 = vector.extract_strided_slice %18 {offsets = [0, 24], sizes = [8, 8], strides = [1, 1]} : vector<8x96xf32> to vector<8x8xf32>
    %83 = vector.shape_cast %82 : vector<8x8xf32> to vector<1x8x8xf32>
    %84 = vector.extract_strided_slice %18 {offsets = [0, 56], sizes = [8, 8], strides = [1, 1]} : vector<8x96xf32> to vector<8x8xf32>
    %85 = vector.shape_cast %84 : vector<8x8xf32> to vector<1x8x8xf32>
    %86 = vector.extract_strided_slice %18 {offsets = [0, 88], sizes = [8, 8], strides = [1, 1]} : vector<8x96xf32> to vector<8x8xf32>
    %87 = vector.shape_cast %86 : vector<8x8xf32> to vector<1x8x8xf32>
    %cst_26 = arith.constant dense<0.000000e+00> : vector<1x8x8xf32>
    %88 = tpu.matmul %83, %85, %cst_26 {dimension_numbers = #tpu.dot_dimension_numbers<[2], [2], [1], [1], [0, 0, 0, 1, 1, 1], [0], [0]>} : vector<1x8x8xf32>, vector<1x8x8xf32>, vector<1x8x8xf32> -> vector<1x8x8xf32>
    %cst_27 = arith.constant 0.353553385 : f32
    %89 = vector.broadcast %cst_27 : f32 to vector<1x8x8xf32>
    %90 = arith.mulf %88, %89 : vector<1x8x8xf32>
    %cst_28 = arith.constant dense<0xFF800000> : vector<1x8xf32>
    %91 = vector.multi_reduction <maximumf>, %90, %cst_28 [2] : vector<1x8x8xf32> to vector<1x8xf32>
    %92 = vector.shape_cast %91 : vector<1x8xf32> to vector<1x8x1xf32>
    %93 = vector.broadcast %92 : vector<1x8x1xf32> to vector<1x8x8xf32>
    %94 = arith.subf %90, %93 : vector<1x8x8xf32>
    %95 = math.exp %94 : vector<1x8x8xf32>
    %cst_29 = arith.constant dense<0.000000e+00> : vector<1x8xf32>
    %96 = vector.multi_reduction <add>, %95, %cst_29 [2] : vector<1x8x8xf32> to vector<1x8xf32>
    %97 = vector.shape_cast %96 : vector<1x8xf32> to vector<1x8x1xf32>
    %98 = tpu.reciprocal %97 : vector<1x8x1xf32> -> vector<1x8x1xf32>
    %99 = vector.broadcast %98 : vector<1x8x1xf32> to vector<1x8x8xf32>
    %100 = arith.mulf %95, %99 : vector<1x8x8xf32>
    %cst_30 = arith.constant dense<0.000000e+00> : vector<1x8x8xf32>
    %101 = tpu.matmul %100, %87, %cst_30 {dimension_numbers = #tpu.dot_dimension_numbers<[2], [1], [1], [2], [0, 0, 0, 1, 1, 2], [0], [0]>} : vector<1x8x8xf32>, vector<1x8x8xf32>, vector<1x8x8xf32> -> vector<1x8x8xf32>
    %102 = vector.shape_cast %101 : vector<1x8x8xf32> to vector<8x8xf32>
    %103 = tpu.concatenate %39, %60, %81, %102 in 1 : vector<8x8xf32>, vector<8x8xf32>, vector<8x8xf32>, vector<8x8xf32> -> vector<8x32xf32>
    %c0_31 = arith.constant 0 : index
    %c0_32 = arith.constant 0 : index
    %c0_33 = arith.constant 0 : index
    %104 = vector.load %arg8[%c0_31, %c0_32, %c0_33] : memref<1x32x32xf32, #tpu.memory_space<vmem>>, vector<1x32x32xf32>
    %105 = vector.shape_cast %104 : vector<1x32x32xf32> to vector<32x32xf32>
    %cst_34 = arith.constant dense<0.000000e+00> : vector<8x32xf32>
    %106 = tpu.matmul %103, %105, %cst_34 {dimension_numbers = #tpu.dot_dimension_numbers<[1], [1], [0], [0], [0, 0, 1, 0], [], []>} : vector<8x32xf32>, vector<32x32xf32>, vector<8x32xf32> -> vector<8x32xf32>
    %107 = vector.broadcast %6 : vector<1x32xf32> to vector<8x32xf32>
    %108 = arith.addf %106, %107 : vector<8x32xf32>
    %109 = arith.addf %3, %108 : vector<8x32xf32>
    %cst_35 = arith.constant dense<0.000000e+00> : vector<8xf32>
    %110 = vector.multi_reduction <add>, %109, %cst_35 [1] : vector<8x32xf32> to vector<8xf32>
    %111 = vector.shape_cast %110 : vector<8xf32> to vector<8x1xf32>
    %cst_36 = arith.constant 3.200000e+01 : f32
    %112 = vector.broadcast %cst_36 : f32 to vector<8x1xf32>
    %113 = arith.divf %111, %112 : vector<8x1xf32>
    %114 = vector.broadcast %113 : vector<8x1xf32> to vector<8x32xf32>
    %115 = arith.subf %109, %114 : vector<8x32xf32>
    %116 = arith.mulf %115, %115 : vector<8x32xf32>
    %cst_37 = arith.constant dense<0.000000e+00> : vector<8xf32>
    %117 = vector.multi_reduction <add>, %116, %cst_37 [1] : vector<8x32xf32> to vector<8xf32>
    %118 = vector.shape_cast %117 : vector<8xf32> to vector<8x1xf32>
    %cst_38 = arith.constant 3.200000e+01 : f32
    %119 = vector.broadcast %cst_38 : f32 to vector<8x1xf32>
    %120 = arith.divf %118, %119 : vector<8x1xf32>
    %121 = vector.broadcast %113 : vector<8x1xf32> to vector<8x32xf32>
    %122 = arith.subf %109, %121 : vector<8x32xf32>
    %cst_39 = arith.constant 9.99999974E-6 : f32
    %123 = vector.broadcast %cst_39 : f32 to vector<8x1xf32>
    %124 = arith.addf %120, %123 : vector<8x1xf32>
    %125 = math.rsqrt %124 : vector<8x1xf32>
    %126 = vector.broadcast %125 : vector<8x1xf32> to vector<8x32xf32>
    %127 = arith.mulf %122, %126 : vector<8x32xf32>
    %128 = vector.broadcast %8 : vector<1x32xf32> to vector<8x32xf32>
    %129 = arith.mulf %127, %128 : vector<8x32xf32>
    %130 = vector.broadcast %9 : vector<1x32xf32> to vector<8x32xf32>
    %131 = arith.addf %129, %130 : vector<8x32xf32>
    %c0_40 = arith.constant 0 : index
    %c0_41 = arith.constant 0 : index
    %c0_42 = arith.constant 0 : index
    %132 = vector.load %arg9[%c0_40, %c0_41, %c0_42] : memref<1x128x32xf32, #tpu.memory_space<vmem>>, vector<1x128x32xf32>
    %133 = vector.shape_cast %132 : vector<1x128x32xf32> to vector<128x32xf32>
    %cst_43 = arith.constant dense<0.000000e+00> : vector<8x128xf32>
    %134 = tpu.matmul %131, %133, %cst_43 {dimension_numbers = #tpu.dot_dimension_numbers<[1], [1], [0], [0], [0, 0, 1, 0], [], []>} : vector<8x32xf32>, vector<128x32xf32>, vector<8x128xf32> -> vector<8x128xf32>
    %c0_44 = arith.constant 0 : index
    %c0_45 = arith.constant 0 : index
    %c0_46 = arith.constant 0 : index
    %135 = vector.load %arg10[%c0_44, %c0_45, %c0_46] : memref<1x1x128xf32, #tpu.memory_space<vmem>>, vector<1x1x128xf32>
    %136 = vector.shape_cast %135 : vector<1x1x128xf32> to vector<1x128xf32>
    %137 = vector.broadcast %136 : vector<1x128xf32> to vector<8x128xf32>
    %138 = arith.addf %134, %137 : vector<8x128xf32>
    %cst_47 = arith.constant 0.000000e+00 : f32
    %139 = vector.broadcast %cst_47 : f32 to vector<8x128xf32>
    %140 = arith.maximumf %138, %139 : vector<8x128xf32>
    %c0_48 = arith.constant 0 : index
    %c0_49 = arith.constant 0 : index
    %c0_50 = arith.constant 0 : index
    %141 = vector.load %arg11[%c0_48, %c0_49, %c0_50] : memref<1x32x128xf32, #tpu.memory_space<vmem>>, vector<1x32x128xf32>
    %142 = vector.shape_cast %141 : vector<1x32x128xf32> to vector<32x128xf32>
    %cst_51 = arith.constant dense<0.000000e+00> : vector<8x32xf32>
    %143 = tpu.matmul %140, %142, %cst_51 {dimension_numbers = #tpu.dot_dimension_numbers<[1], [1], [0], [0], [0, 0, 1, 0], [], []>} : vector<8x128xf32>, vector<32x128xf32>, vector<8x32xf32> -> vector<8x32xf32>
    %144 = vector.broadcast %7 : vector<1x32xf32> to vector<8x32xf32>
    %145 = arith.addf %143, %144 : vector<8x32xf32>
    %146 = arith.addf %131, %145 : vector<8x32xf32>
    %cst_52 = arith.constant dense<0.000000e+00> : vector<8xf32>
    %147 = vector.multi_reduction <add>, %146, %cst_52 [1] : vector<8x32xf32> to vector<8xf32>
    %148 = vector.shape_cast %147 : vector<8xf32> to vector<8x1xf32>
    %cst_53 = arith.constant 3.200000e+01 : f32
    %149 = vector.broadcast %cst_53 : f32 to vector<8x1xf32>
    %150 = arith.divf %148, %149 : vector<8x1xf32>
    %151 = vector.broadcast %150 : vector<8x1xf32> to vector<8x32xf32>
    %152 = arith.subf %146, %151 : vector<8x32xf32>
    %153 = arith.mulf %152, %152 : vector<8x32xf32>
    %cst_54 = arith.constant dense<0.000000e+00> : vector<8xf32>
    %154 = vector.multi_reduction <add>, %153, %cst_54 [1] : vector<8x32xf32> to vector<8xf32>
    %155 = vector.shape_cast %154 : vector<8xf32> to vector<8x1xf32>
    %cst_55 = arith.constant 3.200000e+01 : f32
    %156 = vector.broadcast %cst_55 : f32 to vector<8x1xf32>
    %157 = arith.divf %155, %156 : vector<8x1xf32>
    %158 = vector.broadcast %150 : vector<8x1xf32> to vector<8x32xf32>
    %159 = arith.subf %146, %158 : vector<8x32xf32>
    %cst_56 = arith.constant 9.99999974E-6 : f32
    %160 = vector.broadcast %cst_56 : f32 to vector<8x1xf32>
    %161 = arith.addf %157, %160 : vector<8x1xf32>
    %162 = math.rsqrt %161 : vector<8x1xf32>
    %163 = vector.broadcast %162 : vector<8x1xf32> to vector<8x32xf32>
    %164 = arith.mulf %159, %163 : vector<8x32xf32>
    %165 = vector.broadcast %10 : vector<1x32xf32> to vector<8x32xf32>
    %166 = arith.mulf %164, %165 : vector<8x32xf32>
    %167 = vector.broadcast %11 : vector<1x32xf32> to vector<8x32xf32>
    %168 = arith.addf %166, %167 : vector<8x32xf32>
    %c0_57 = arith.constant 0 : index
    %c0_58 = arith.constant 0 : index
    %169 = vector.load %arg14[%c0_57, %c0_58] : memref<8x32xf32, #tpu.memory_space<vmem>>, vector<8x32xf32>
    tpu.vector_store %arg14[%c0_57, %c0_58], %168 {strides = array<i32>} : memref<8x32xf32, #tpu.memory_space<vmem>>, vector<8x32xf32>,
    %c1_i32 = arith.constant 1 : i32
    %170 = arith.cmpi eq, %arg1, %c1_i32 : i32
    %171 = arith.extui %170 : i1 to i32
    %c0_i32_59 = arith.constant 0 : i32
    %172 = arith.cmpi ne, %171, %c0_i32_59 : i32
    scf.if %172 {
      %173 = vector.shape_cast %168 : vector<8x32xf32> to vector<1x8x32xf32>
      %cst_60 = arith.constant dense<0.000000e+00> : vector<1x32xf32>
      %174 = vector.multi_reduction <add>, %173, %cst_60 [1] : vector<1x8x32xf32> to vector<1x32xf32>
      %175 = vector.shape_cast %174 : vector<1x32xf32> to vector<1x1x32xf32>
      %cst_61 = arith.constant 1.250000e-01 : f32
      %176 = vector.broadcast %cst_61 : f32 to vector<1x1x32xf32>
      %177 = arith.mulf %175, %176 : vector<1x1x32xf32>
      %c0_62 = arith.constant 0 : index
      %c0_63 = arith.constant 0 : index
      %c0_64 = arith.constant 0 : index
      %178 = vector.load %arg13[%c0_62, %c0_63, %c0_64] : memref<1x1x32xf32, #tpu.memory_space<vmem>>, vector<1x1x32xf32>
      tpu.vector_store %arg13[%c0_62, %c0_63, %c0_64], %177 {strides = array<i32>} : memref<1x1x32xf32, #tpu.memory_space<vmem>>, vector<1x1x32xf32>,
    } else {
    }
    return
  }
  func.func @transform_0(%arg0: i32, %arg1: i32) -> (i32, i32, i32) {
    %c0_i32 = arith.constant 0 : i32
    %c0_i32_0 = arith.constant 0 : i32
    %c0_i32_1 = arith.constant 0 : i32
    return %arg0, %c0_i32, %c0_i32_0 : i32, i32, i32
  }
  func.func @transform_1(%arg0: i32, %arg1: i32) -> (i32, i32) {
    %c0_i32 = arith.constant 0 : i32
    %c0_i32_0 = arith.constant 0 : i32
    %c0_i32_1 = arith.constant 0 : i32
    return %c0_i32, %c0_i32_0 : i32, i32
  }
  func.func @transform_2(%arg0: i32, %arg1: i32) -> (i32, i32) {
    %c0_i32 = arith.constant 0 : i32
    %c0_i32_0 = arith.constant 0 : i32
    %c0_i32_1 = arith.constant 0 : i32
    return %c0_i32, %c0_i32_0 : i32, i32
  }
  func.func @transform_3(%arg0: i32, %arg1: i32) -> (i32, i32) {
    %c0_i32 = arith.constant 0 : i32
    %c0_i32_0 = arith.constant 0 : i32
    %c0_i32_1 = arith.constant 0 : i32
    return %c0_i32, %c0_i32_0 : i32, i32
  }
  func.func @transform_4(%arg0: i32, %arg1: i32) -> (i32, i32, i32) {
    %c0_i32 = arith.constant 0 : i32
    %c0_i32_0 = arith.constant 0 : i32
    %c0_i32_1 = arith.constant 0 : i32
    return %arg1, %c0_i32, %c0_i32_0 : i32, i32, i32
  }
  func.func @transform_5(%arg0: i32, %arg1: i32) -> (i32, i32, i32) {
    %c0_i32 = arith.constant 0 : i32
    %c0_i32_0 = arith.constant 0 : i32
    %c0_i32_1 = arith.constant 0 : i32
    return %arg1, %c0_i32, %c0_i32_0 : i32, i32, i32
  }
  func.func @transform_6(%arg0: i32, %arg1: i32) -> (i32, i32, i32) {
    %c0_i32 = arith.constant 0 : i32
    %c0_i32_0 = arith.constant 0 : i32
    %c0_i32_1 = arith.constant 0 : i32
    return %arg1, %c0_i32, %c0_i32_0 : i32, i32, i32
  }
  func.func @transform_7(%arg0: i32, %arg1: i32) -> (i32, i32, i32) {
    %c0_i32 = arith.constant 0 : i32
    %c0_i32_0 = arith.constant 0 : i32
    %c0_i32_1 = arith.constant 0 : i32
    return %arg1, %c0_i32, %c0_i32_0 : i32, i32, i32
  }
  func.func @transform_8(%arg0: i32, %arg1: i32) -> (i32, i32, i32) {
    %c0_i32 = arith.constant 0 : i32
    %c0_i32_0 = arith.constant 0 : i32
    %c0_i32_1 = arith.constant 0 : i32
    return %arg1, %c0_i32, %c0_i32_0 : i32, i32, i32
  }
  func.func @transform_9(%arg0: i32, %arg1: i32) -> (i32, i32, i32) {
    %c0_i32 = arith.constant 0 : i32
    %c0_i32_0 = arith.constant 0 : i32
    %c0_i32_1 = arith.constant 0 : i32
    return %arg1, %c0_i32, %c0_i32_0 : i32, i32, i32
  }
  func.func @transform_10(%arg0: i32, %arg1: i32) -> (i32, i32, i32) {
    %c0_i32 = arith.constant 0 : i32
    %c0_i32_0 = arith.constant 0 : i32
    %c0_i32_1 = arith.constant 0 : i32
    return %arg1, %c0_i32, %c0_i32_0 : i32, i32, i32
  }
  func.func @transform_11(%arg0: i32, %arg1: i32) -> (i32, i32, i32) {
    %c0_i32 = arith.constant 0 : i32
    %c0_i32_0 = arith.constant 0 : i32
    %c0_i32_1 = arith.constant 0 : i32
    return %arg0, %c0_i32, %c0_i32_0 : i32, i32, i32
  }
}

</mosaic_0001>

<llo_original>
// kernel: tpu_custom_call.1
$region0: #{tpu_custom_call.1}
  #allocation0 [shape = 'u32[]', space=smem, size = 0x4, offset = 0x4, fixed_abs, tag = 'smem constant byte address 0x4 - core index']
  #allocation1 [shape = 'u32[72,128]{1,0:T(1,128)}', space=vmem, size = 0x9000, scoped, tag = 'internal scratch']
  #allocation2 [shape = 'f32[8,32]{1,0:T(8,128)}', space=vmem, size = 0x1000, scoped, tag = 'scratch operand']
  %s0 = inlined_call_operand.vmem [shape: f32[2,1,8], index: 0, kind: input, shape index: {}]
  %s1 = inlined_call_operand.vmem [shape: f32[1,32], index: 1, kind: input, shape index: {}]
  %s2 = inlined_call_operand.vmem [shape: f32[1,32], index: 2, kind: input, shape index: {}]
  %s3 = inlined_call_operand.vmem [shape: f32[8,32], index: 3, kind: input, shape index: {}]
  %s4 = inlined_call_operand.vmem [shape: f32[2,96,32], index: 4, kind: input, shape index: {}]
  %s5 = inlined_call_operand.vmem [shape: f32[2,1,96], index: 5, kind: input, shape index: {}]
  %s6 = inlined_call_operand.vmem [shape: f32[2,32,32], index: 6, kind: input, shape index: {}]
  %s7 = inlined_call_operand.vmem [shape: f32[2,128,32], index: 7, kind: input, shape index: {}]
  %s8 = inlined_call_operand.vmem [shape: f32[2,1,128], index: 8, kind: input, shape index: {}]
  %s9 = inlined_call_operand.vmem [shape: f32[2,32,128], index: 9, kind: input, shape index: {}]
  %s10 = inlined_call_operand.vmem [shape: f32[2,6,32], index: 10, kind: input, shape index: {}]
  %s11 = inlined_call_operand.hbm [shape: f32[2,1,32], index: 11, kind: output, shape index: {}]
  %s12 = sld [smem:[#allocation0]]
  $region85: #{tpu_custom_call.1} parent=0
    _
  %s14 = ssub.s32 1, %s12
  %s15 = scalar_select 0, %s14, %s12
  $region1: #{tpu_custom_call.1} parent=0
    #allocation3 [shape = 'u8[1024]{0}', space=vmem, size = 0x400, scoped, tag = 'output window, operand 0']
    #allocation4 [shape = 's32[2]{0}', space=sflag, size = 0x8, scoped, tag = 'scoped memory for tpu_custom_call.1']
    %16 = vsyncpa [#allocation4], 0
    %s17 = scalar_lea.sflag [#allocation4], 1
    %18 = vsyncpa %s17, 0
    loop: start=0, step=1, limit=6
    $region2: #{tpu_custom_call.1} parent=1 // loop_pre_header
      _
    $region3: #{tpu_custom_call.1} parent=1 // loop_header
      %s20 = sphi 0, %s24
      %p21 = scmp.ge.s32.totalorder %s20, 6
      %s27 = sphi 0, %s39
      %s28 = sphi 0, %s35
      %s29 = sphi 0, %s27
      %s30 = sphi 0, %s28
      %s31 = sphi 0, %s29
      %s32 = sphi 0, %s30
      %s42 = sphi 0, %s44
      %s45 = sphi 0, %s42
      %s46 = sphi 0, %s45
      %s62 = sphi 0, %s46
      %s66 = sphi 0, %s66
      %s68 = sphi 0, %s66
      %s69 = sphi 0, %s68
      %s83 = sphi 0, %s69
      %s87 = sphi 0, %s87
      %s89 = sphi 0, %s87
      %s90 = sphi 0, %s89
      %s104 = sphi 0, %s90
      %s108 = sphi 0, %s108
      %s110 = sphi 0, %s108
      %s111 = sphi 0, %s110
      %s125 = sphi 0, %s111
      %s131 = sphi 0, %s133
      %s134 = sphi 0, %s131
      %s135 = sphi 0, %s134
      %s151 = sphi 0, %s135
      %s157 = sphi 0, %s159
      %s160 = sphi 0, %s157
      %s161 = sphi 0, %s160
      %s177 = sphi 0, %s161
      %s183 = sphi 0, %s185
      %s186 = sphi 0, %s183
      %s187 = sphi 0, %s186
      %s203 = sphi 0, %s187
      %s209 = sphi 0, %s211
      %s212 = sphi 0, %s209
      %s213 = sphi 0, %s212
      %s229 = sphi 0, %s213
      %s235 = sphi 0, %s237
      %s238 = sphi 0, %s235
      %s239 = sphi 0, %s238
      %s255 = sphi 0, %s239
      %s261 = sphi 0, %s263
      %s264 = sphi 0, %s261
      %s265 = sphi 0, %s264
      %s281 = sphi 0, %s265
      %s287 = sphi 0, %s289
      %s290 = sphi 0, %s287
      %s291 = sphi 0, %s290
      %s307 = sphi 0, %s291
      %s313 = sphi 0, %s315
      %s316 = sphi 0, %s313
      %s317 = sphi 0, %s316
      %s333 = sphi 0, %s317
    $region4: #{tpu_custom_call.1} parent=1 // loop_header_branch
      %23 = sbr.rel (%p21) target = $region8
    $region5: #{tpu_custom_call.1} parent=1 // loop_body
      %s25 = ssub.s32 %s20, 1
      %s26 = ssub.s32 %s20, 2
      %s33 = sadd.s32 1, %s28
      %p34 = scmp.ge.s32.totalorder %s33, 2
      %s35 = scalar_select %p34, 0, %s33
      %s36 = sadd.s32 1, %s27
      %s37 = scalar_select %p34, %s36, %s27
      %p38 = scmp.ge.s32.totalorder %s37, 2
      %s39 = scalar_select %p38, 0, %s37
      %s40 = ssub.s32 %s27, %s39
      %p41 = scmp.eq.s32.totalorder %s40, 0
      %s43 = sadd.s32 %s42, 1
      %s44 = scalar_select %p41, %s42, %s43
      %p47 = pneg %p41
      %p48 = scmp.eq.s32.totalorder %s20, 3
      %p49 = por %p47, %p48
      %p50 = scmp.ne.s32.totalorder %s42, %s45
      %p51 = scmp.eq.s32.totalorder %s20, 0
      %p52 = por %p50, %p51
      %p53 = scmp.ne.s32.totalorder %s42, %s45
      %p54 = scmp.eq.s32.totalorder %s25, 3
      %p55 = por %p53, %p54
      %p56 = scmp.ne.s32.totalorder %s45, %s46
      %p57 = scmp.eq.s32.totalorder %s25, 0
      %p58 = por %p56, %p57
      %p59 = scmp.ne.s32.totalorder %s45, %s46
      %p60 = scmp.eq.s32.totalorder %s26, 3
      %p61 = por %p59, %p60
      %p63 = scmp.ne.s32.totalorder %s46, %s62
      %p64 = scmp.eq.s32.totalorder %s26, 0
      %p65 = por %p63, %p64
      %s67 = sadd.s32 %s66, 1
      %p70 = scmp.eq.s32.totalorder %s20, 3
      %p71 = scmp.ne.s32.totalorder %s66, %s68
      %p72 = scmp.eq.s32.totalorder %s20, 0
      %p73 = por %p71, %p72
      %p74 = scmp.ne.s32.totalorder %s66, %s68
      %p75 = scmp.eq.s32.totalorder %s25, 3
      %p76 = por %p74, %p75
      %p77 = scmp.ne.s32.totalorder %s68, %s69
      %p78 = scmp.eq.s32.totalorder %s25, 0
      %p79 = por %p77, %p78
      %p80 = scmp.ne.s32.totalorder %s68, %s69
      %p81 = scmp.eq.s32.totalorder %s26, 3
      %p82 = por %p80, %p81
      %p84 = scmp.ne.s32.totalorder %s69, %s83
      %p85 = scmp.eq.s32.totalorder %s26, 0
      %p86 = por %p84, %p85
      %s88 = sadd.s32 %s87, 1
      %p91 = scmp.eq.s32.totalorder %s20, 3
      %p92 = scmp.ne.s32.totalorder %s87, %s89
      %p93 = scmp.eq.s32.totalorder %s20, 0
      %p94 = por %p92, %p93
      %p95 = scmp.ne.s32.totalorder %s87, %s89
      %p96 = scmp.eq.s32.totalorder %s25, 3
      %p97 = por %p95, %p96
      %p98 = scmp.ne.s32.totalorder %s89, %s90
      %p99 = scmp.eq.s32.totalorder %s25, 0
      %p100 = por %p98, %p99
      %p101 = scmp.ne.s32.totalorder %s89, %s90
      %p102 = scmp.eq.s32.totalorder %s26, 3
      %p103 = por %p101, %p102
      %p105 = scmp.ne.s32.totalorder %s90, %s104
      %p106 = scmp.eq.s32.totalorder %s26, 0
      %p107 = por %p105, %p106
      %s109 = sadd.s32 %s108, 1
      %p112 = scmp.eq.s32.totalorder %s20, 3
      %p113 = scmp.ne.s32.totalorder %s108, %s110
      %p114 = scmp.eq.s32.totalorder %s20, 0
      %p115 = por %p113, %p114
      %p116 = scmp.ne.s32.totalorder %s108, %s110
      %p117 = scmp.eq.s32.totalorder %s25, 3
      %p118 = por %p116, %p117
      %p119 = scmp.ne.s32.totalorder %s110, %s111
      %p120 = scmp.eq.s32.totalorder %s25, 0
      %p121 = por %p119, %p120
      %p122 = scmp.ne.s32.totalorder %s110, %s111
      %p123 = scmp.eq.s32.totalorder %s26, 3
      %p124 = por %p122, %p123
      %p126 = scmp.ne.s32.totalorder %s111, %s125
      %p127 = scmp.eq.s32.totalorder %s26, 0
      %p128 = por %p126, %p127
      %s129 = ssub.s32 %s28, %s35
      %p130 = scmp.eq.s32.totalorder %s129, 0
      %s132 = sadd.s32 %s131, 1
      %s133 = scalar_select %p130, %s131, %s132
      %p136 = pneg %p130
      %p137 = scmp.eq.s32.totalorder %s20, 3
      %p138 = por %p136, %p137
      %p139 = scmp.ne.s32.totalorder %s131, %s134
      %p140 = scmp.eq.s32.totalorder %s20, 0
      %p141 = por %p139, %p140
      %p142 = scmp.ne.s32.totalorder %s131, %s134
      %p143 = scmp.eq.s32.totalorder %s25, 3
      %p144 = por %p142, %p143
      %p145 = scmp.ne.s32.totalorder %s134, %s135
      %p146 = scmp.eq.s32.totalorder %s25, 0
      %p147 = por %p145, %p146
      %p148 = scmp.ne.s32.totalorder %s134, %s135
      %p149 = scmp.eq.s32.totalorder %s26, 3
      %p150 = por %p148, %p149
      %p152 = scmp.ne.s32.totalorder %s135, %s151
      %p153 = scmp.eq.s32.totalorder %s26, 0
      %p154 = por %p152, %p153
      %s155 = ssub.s32 %s28, %s35
      %p156 = scmp.eq.s32.totalorder %s155, 0
      %s158 = sadd.s32 %s157, 1
      %s159 = scalar_select %p156, %s157, %s158
      %p162 = pneg %p156
      %p163 = scmp.eq.s32.totalorder %s20, 3
      %p164 = por %p162, %p163
      %p165 = scmp.ne.s32.totalorder %s157, %s160
      %p166 = scmp.eq.s32.totalorder %s20, 0
      %p167 = por %p165, %p166
      %p168 = scmp.ne.s32.totalorder %s157, %s160
      %p169 = scmp.eq.s32.totalorder %s25, 3
      %p170 = por %p168, %p169
      %p171 = scmp.ne.s32.totalorder %s160, %s161
      %p172 = scmp.eq.s32.totalorder %s25, 0
      %p173 = por %p171, %p172
      %p174 = scmp.ne.s32.totalorder %s160, %s161
      %p175 = scmp.eq.s32.totalorder %s26, 3
      %p176 = por %p174, %p175
      %p178 = scmp.ne.s32.totalorder %s161, %s177
      %p179 = scmp.eq.s32.totalorder %s26, 0
      %p180 = por %p178, %p179
      %s181 = ssub.s32 %s28, %s35
      %p182 = scmp.eq.s32.totalorder %s181, 0
      %s184 = sadd.s32 %s183, 1
      %s185 = scalar_select %p182, %s183, %s184
      %p188 = pneg %p182
      %p189 = scmp.eq.s32.totalorder %s20, 3
      %p190 = por %p188, %p189
      %p191 = scmp.ne.s32.totalorder %s183, %s186
      %p192 = scmp.eq.s32.totalorder %s20, 0
      %p193 = por %p191, %p192
      %p194 = scmp.ne.s32.totalorder %s183, %s186
      %p195 = scmp.eq.s32.totalorder %s25, 3
      %p196 = por %p194, %p195
      %p197 = scmp.ne.s32.totalorder %s186, %s187
      %p198 = scmp.eq.s32.totalorder %s25, 0
      %p199 = por %p197, %p198
      %p200 = scmp.ne.s32.totalorder %s186, %s187
      %p201 = scmp.eq.s32.totalorder %s26, 3
      %p202 = por %p200, %p201
      %p204 = scmp.ne.s32.totalorder %s187, %s203
      %p205 = scmp.eq.s32.totalorder %s26, 0
      %p206 = por %p204, %p205
      %s207 = ssub.s32 %s28, %s35
      %p208 = scmp.eq.s32.totalorder %s207, 0
      %s210 = sadd.s32 %s209, 1
      %s211 = scalar_select %p208, %s209, %s210
      %p214 = pneg %p208
      %p215 = scmp.eq.s32.totalorder %s20, 3
      %p216 = por %p214, %p215
      %p217 = scmp.ne.s32.totalorder %s209, %s212
      %p218 = scmp.eq.s32.totalorder %s20, 0
      %p219 = por %p217, %p218
      %p220 = scmp.ne.s32.totalorder %s209, %s212
      %p221 = scmp.eq.s32.totalorder %s25, 3
      %p222 = por %p220, %p221
      %p223 = scmp.ne.s32.totalorder %s212, %s213
      %p224 = scmp.eq.s32.totalorder %s25, 0
      %p225 = por %p223, %p224
      %p226 = scmp.ne.s32.totalorder %s212, %s213
      %p227 = scmp.eq.s32.totalorder %s26, 3
      %p228 = por %p226, %p227
      %p230 = scmp.ne.s32.totalorder %s213, %s229
      %p231 = scmp.eq.s32.totalorder %s26, 0
      %p232 = por %p230, %p231
      %s233 = ssub.s32 %s28, %s35
      %p234 = scmp.eq.s32.totalorder %s233, 0
      %s236 = sadd.s32 %s235, 1
      %s237 = scalar_select %p234, %s235, %s236
      %p240 = pneg %p234
      %p241 = scmp.eq.s32.totalorder %s20, 3
      %p242 = por %p240, %p241
      %p243 = scmp.ne.s32.totalorder %s235, %s238
      %p244 = scmp.eq.s32.totalorder %s20, 0
      %p245 = por %p243, %p244
      %p246 = scmp.ne.s32.totalorder %s235, %s238
      %p247 = scmp.eq.s32.totalorder %s25, 3
      %p248 = por %p246, %p247
      %p249 = scmp.ne.s32.totalorder %s238, %s239
      %p250 = scmp.eq.s32.totalorder %s25, 0
      %p251 = por %p249, %p250
      %p252 = scmp.ne.s32.totalorder %s238, %s239
      %p253 = scmp.eq.s32.totalorder %s26, 3
      %p254 = por %p252, %p253
      %p256 = scmp.ne.s32.totalorder %s239, %s255
      %p257 = scmp.eq.s32.totalorder %s26, 0
      %p258 = por %p256, %p257
      %s259 = ssub.s32 %s28, %s35
      %p260 = scmp.eq.s32.totalorder %s259, 0
      %s262 = sadd.s32 %s261, 1
      %s263 = scalar_select %p260, %s261, %s262
      %p266 = pneg %p260
      %p267 = scmp.eq.s32.totalorder %s20, 3
      %p268 = por %p266, %p267
      %p269 = scmp.ne.s32.totalorder %s261, %s264
      %p270 = scmp.eq.s32.totalorder %s20, 0
      %p271 = por %p269, %p270
      %p272 = scmp.ne.s32.totalorder %s261, %s264
      %p273 = scmp.eq.s32.totalorder %s25, 3
      %p274 = por %p272, %p273
      %p275 = scmp.ne.s32.totalorder %s264, %s265
      %p276 = scmp.eq.s32.totalorder %s25, 0
      %p277 = por %p275, %p276
      %p278 = scmp.ne.s32.totalorder %s264, %s265
      %p279 = scmp.eq.s32.totalorder %s26, 3
      %p280 = por %p278, %p279
      %p282 = scmp.ne.s32.totalorder %s265, %s281
      %p283 = scmp.eq.s32.totalorder %s26, 0
      %p284 = por %p282, %p283
      %s285 = ssub.s32 %s28, %s35
      %p286 = scmp.eq.s32.totalorder %s285, 0
      %s288 = sadd.s32 %s287, 1
      %s289 = scalar_select %p286, %s287, %s288
      %p292 = pneg %p286
      %p293 = scmp.eq.s32.totalorder %s20, 3
      %p294 = por %p292, %p293
      %p295 = scmp.ne.s32.totalorder %s287, %s290
      %p296 = scmp.eq.s32.totalorder %s20, 0
      %p297 = por %p295, %p296
      %p298 = scmp.ne.s32.totalorder %s287, %s290
      %p299 = scmp.eq.s32.totalorder %s25, 3
      %p300 = por %p298, %p299
      %p301 = scmp.ne.s32.totalorder %s290, %s291
      %p302 = scmp.eq.s32.totalorder %s25, 0
      %p303 = por %p301, %p302
      %p304 = scmp.ne.s32.totalorder %s290, %s291
      %p305 = scmp.eq.s32.totalorder %s26, 3
      %p306 = por %p304, %p305
      %p308 = scmp.ne.s32.totalorder %s291, %s307
      %p309 = scmp.eq.s32.totalorder %s26, 0
      %p310 = por %p308, %p309
      %s311 = ssub.s32 %s27, %s39
      %p312 = scmp.eq.s32.totalorder %s311, 0
      %s314 = sadd.s32 %s313, 1
      %s315 = scalar_select %p312, %s313, %s314
      %p318 = pneg %p312
      %p319 = scmp.eq.s32.totalorder %s20, 3
      %p320 = por %p318, %p319
      %p321 = scmp.ne.s32.totalorder %s313, %s316
      %p322 = scmp.eq.s32.totalorder %s20, 0
      %p323 = por %p321, %p322
      %p324 = scmp.ne.s32.totalorder %s313, %s316
      %p325 = scmp.eq.s32.totalorder %s25, 3
      %p326 = por %p324, %p325
      %p327 = scmp.ne.s32.totalorder %s316, %s317
      %p328 = scmp.eq.s32.totalorder %s25, 0
      %p329 = por %p327, %p328
      %p330 = scmp.ne.s32.totalorder %s316, %s317
      %p331 = scmp.eq.s32.totalorder %s26, 3
      %p332 = por %p330, %p331
      %p334 = scmp.ne.s32.totalorder %s317, %s333
      %p335 = scmp.eq.s32.totalorder %s26, 0
      %p336 = por %p334, %p335
      %p337 = scmp.le.s32.totalorder 1, %s20
      %p338 = scmp.lt.s32.totalorder %s20, 5
      %p339 = pnand %p337, %p338
      %p340 = pneg %p339
      // Predicated region
      $region9: #{tpu_custom_call.1} parent=5 // pred_check
        _
      $region10: #{tpu_custom_call.1} parent=5 // pred_check_branch
        %342 = sbr.rel (%p339) target = $region12
      $region11: #{tpu_custom_call.1} parent=5 // pred_region
        %s343 = ssub.s32 %s20, 1
        // Predicated region
        $region13: #{tpu_custom_call.1} parent=11 // pred_check
          %p344 = pneg %p79
        $region14: #{tpu_custom_call.1} parent=11 // pred_check_branch
          %346 = sbr.rel (%p344) target = $region16
        $region15: #{tpu_custom_call.1} parent=11 // pred_region
          _
        $region16: #{tpu_custom_call.1} parent=11 // pred_fallthru
          _
        // Predicated region
        $region17: #{tpu_custom_call.1} parent=11 // pred_check
          %p347 = pneg %p100
        $region18: #{tpu_custom_call.1} parent=11 // pred_check_branch
          %349 = sbr.rel (%p347) target = $region20
        $region19: #{tpu_custom_call.1} parent=11 // pred_region
          _
        $region20: #{tpu_custom_call.1} parent=11 // pred_fallthru
          _
        // Predicated region
        $region21: #{tpu_custom_call.1} parent=11 // pred_check
          %p350 = pneg %p121
        $region22: #{tpu_custom_call.1} parent=11 // pred_check_branch
          %352 = sbr.rel (%p350) target = $region24
        $region23: #{tpu_custom_call.1} parent=11 // pred_region
          _
        $region24: #{tpu_custom_call.1} parent=11 // pred_fallthru
          _
      $region12: #{tpu_custom_call.1} parent=5 // pred_fallthru
        _
      %p353 = scmp.lt.s32.totalorder %s20, 4
      // Predicated region
      $region25: #{tpu_custom_call.1} parent=5 // pred_check
        %p354 = pneg %p353
      $region26: #{tpu_custom_call.1} parent=5 // pred_check_branch
        %356 = sbr.rel (%p354) target = $region28
      $region27: #{tpu_custom_call.1} parent=5 // pred_region
        // Predicated region
        $region29: #{tpu_custom_call.1} parent=27 // pred_check
          %p357 = pneg %p52
        $region30: #{tpu_custom_call.1} parent=27 // pred_check_branch
          %359 = sbr.rel (%p357) target = $region32
        $region31: #{tpu_custom_call.1} parent=27 // pred_region
          %p360 = scmp.lt.s32.totalorder %s27, 1
          %s361 = scalar_select %p360, %s27, 1
          %s362 = scalar_lea.vmem %s0, %s361
        $region32: #{tpu_custom_call.1} parent=27 // pred_fallthru
          _
        // Predicated region
        $region33: #{tpu_custom_call.1} parent=27 // pred_check
          %p363 = pneg %p141
        $region34: #{tpu_custom_call.1} parent=27 // pred_check_branch
          %365 = sbr.rel (%p363) target = $region36
        $region35: #{tpu_custom_call.1} parent=27 // pred_region
          %p366 = scmp.lt.s32.totalorder %s28, 1
          %s367 = scalar_select %p366, %s28, 1
          %s368 = smul.addr %s367, 12
          %s369 = smul.addr %s368, 8
          %s370 = scalar_lea.vmem %s4, %s369
        $region36: #{tpu_custom_call.1} parent=27 // pred_fallthru
          _
        // Predicated region
        $region37: #{tpu_custom_call.1} parent=27 // pred_check
          %p371 = pneg %p167
        $region38: #{tpu_custom_call.1} parent=27 // pred_check_branch
          %373 = sbr.rel (%p371) target = $region40
        $region39: #{tpu_custom_call.1} parent=27 // pred_region
          %p374 = scmp.lt.s32.totalorder %s28, 1
          %s375 = scalar_select %p374, %s28, 1
          %s376 = scalar_lea.vmem %s5, %s375
        $region40: #{tpu_custom_call.1} parent=27 // pred_fallthru
          _
        // Predicated region
        $region41: #{tpu_custom_call.1} parent=27 // pred_check
          %p377 = pneg %p193
        $region42: #{tpu_custom_call.1} parent=27 // pred_check_branch
          %379 = sbr.rel (%p377) target = $region44
        $region43: #{tpu_custom_call.1} parent=27 // pred_region
          %p380 = scmp.lt.s32.totalorder %s28, 1
          %s381 = scalar_select %p380, %s28, 1
          %s382 = smul.addr %s381, 4
          %s383 = smul.addr %s382, 8
          %s384 = scalar_lea.vmem %s6, %s383
        $region44: #{tpu_custom_call.1} parent=27 // pred_fallthru
          _
        // Predicated region
        $region45: #{tpu_custom_call.1} parent=27 // pred_check
          %p385 = pneg %p219
        $region46: #{tpu_custom_call.1} parent=27 // pred_check_branch
          %387 = sbr.rel (%p385) target = $region48
        $region47: #{tpu_custom_call.1} parent=27 // pred_region
          %p388 = scmp.lt.s32.totalorder %s28, 1
          %s389 = scalar_select %p388, %s28, 1
          %s390 = smul.addr %s389, 16
          %s391 = smul.addr %s390, 8
          %s392 = scalar_lea.vmem %s7, %s391
        $region48: #{tpu_custom_call.1} parent=27 // pred_fallthru
          _
        // Predicated region
        $region49: #{tpu_custom_call.1} parent=27 // pred_check
          %p393 = pneg %p245
        $region50: #{tpu_custom_call.1} parent=27 // pred_check_branch
          %395 = sbr.rel (%p393) target = $region52
        $region51: #{tpu_custom_call.1} parent=27 // pred_region
          %p396 = scmp.lt.s32.totalorder %s28, 1
          %s397 = scalar_select %p396, %s28, 1
          %s398 = scalar_lea.vmem %s8, %s397
        $region52: #{tpu_custom_call.1} parent=27 // pred_fallthru
          _
        // Predicated region
        $region53: #{tpu_custom_call.1} parent=27 // pred_check
          %p399 = pneg %p271
        $region54: #{tpu_custom_call.1} parent=27 // pred_check_branch
          %401 = sbr.rel (%p399) target = $region56
        $region55: #{tpu_custom_call.1} parent=27 // pred_region
          %p402 = scmp.lt.s32.totalorder %s28, 1
          %s403 = scalar_select %p402, %s28, 1
          %s404 = smul.addr %s403, 4
          %s405 = smul.addr %s404, 8
          %s406 = scalar_lea.vmem %s9, %s405
        $region56: #{tpu_custom_call.1} parent=27 // pred_fallthru
          _
        // Predicated region
        $region57: #{tpu_custom_call.1} parent=27 // pred_check
          %p407 = pneg %p297
        $region58: #{tpu_custom_call.1} parent=27 // pred_check_branch
          %409 = sbr.rel (%p407) target = $region60
        $region59: #{tpu_custom_call.1} parent=27 // pred_region
          %p410 = scmp.lt.s32.totalorder %s28, 1
          %s411 = scalar_select %p410, %s28, 1
          %s412 = smul.addr %s411, 8
          %s413 = scalar_lea.vmem %s10, %s412
        $region60: #{tpu_custom_call.1} parent=27 // pred_fallthru
          _
      $region28: #{tpu_custom_call.1} parent=5 // pred_fallthru
        _
      %p414 = scmp.le.s32.totalorder 1, %s20
      %p415 = scmp.lt.s32.totalorder %s20, 5
      %p416 = pnand %p414, %p415
      %p417 = pneg %p416
      // Predicated region
      $region61: #{tpu_custom_call.1} parent=5 // pred_check
        _
      $region62: #{tpu_custom_call.1} parent=5 // pred_check_branch
        %419 = sbr.rel (%p416) target = $region64
      $region63: #{tpu_custom_call.1} parent=5 // pred_region
        %s420 = ssub.s32 %s20, 1
        %p421 = scmp.lt.s32.totalorder %s29, 1
        %s422 = scalar_select %p421, %s29, 1
        %s423 = scalar_lea.vmem %s0, %s422
        %p424 = pneg %p58
        %p425 = pneg %p55
        %p426 = pneg %p79
        %p427 = pneg %p76
        %p428 = pneg %p100
        %p429 = pneg %p97
        %p430 = pneg %p121
        %p431 = pneg %p118
        %p432 = scmp.lt.s32.totalorder %s30, 1
        %s433 = scalar_select %p432, %s30, 1
        %s434 = smul.addr %s433, 12
        %s435 = smul.addr %s434, 8
        %s436 = scalar_lea.vmem %s4, %s435
        %p437 = pneg %p147
        %p438 = pneg %p144
        %p439 = scmp.lt.s32.totalorder %s30, 1
        %s440 = scalar_select %p439, %s30, 1
        %s441 = scalar_lea.vmem %s5, %s440
        %p442 = pneg %p173
        %p443 = pneg %p170
        %p444 = scmp.lt.s32.totalorder %s30, 1
        %s445 = scalar_select %p444, %s30, 1
        %s446 = smul.addr %s445, 4
        %s447 = smul.addr %s446, 8
        %s448 = scalar_lea.vmem %s6, %s447
        %p449 = pneg %p199
        %p450 = pneg %p196
        %p451 = scmp.lt.s32.totalorder %s30, 1
        %s452 = scalar_select %p451, %s30, 1
        %s453 = smul.addr %s452, 16
        %s454 = smul.addr %s453, 8
        %s455 = scalar_lea.vmem %s7, %s454
        %p456 = pneg %p225
        %p457 = pneg %p222
        %p458 = scmp.lt.s32.totalorder %s30, 1
        %s459 = scalar_select %p458, %s30, 1
        %s460 = scalar_lea.vmem %s8, %s459
        %p461 = pneg %p251
        %p462 = pneg %p248
        %p463 = scmp.lt.s32.totalorder %s30, 1
        %s464 = scalar_select %p463, %s30, 1
        %s465 = smul.addr %s464, 4
        %s466 = smul.addr %s465, 8
        %s467 = scalar_lea.vmem %s9, %s466
        %p468 = pneg %p277
        %p469 = pneg %p274
        %p470 = scmp.lt.s32.totalorder %s30, 1
        %s471 = scalar_select %p470, %s30, 1
        %s472 = smul.addr %s471, 8
        %s473 = scalar_lea.vmem %s10, %s472
        %p474 = pneg %p303
        %p475 = pneg %p300
        %p476 = pneg %p329
        %p477 = pneg %p326
        %s478 = sand.u32 %s316, 1
        %s479 = scalar_lea.sflag [#allocation4], %s478
        %s480 = sand.u32 %s316, 1
        %s481 = scalar_lea.vmem [#allocation3], %s480
        %p482 = scmp.lt.s32.totalorder %s29, 1
        %s483 = scalar_select %p482, %s29, 1
        %s484 = scalar_lea.vmem %s0, %s483
        %p485 = scmp.lt.s32.totalorder %s30, 1
        %s486 = scalar_select %p485, %s30, 1
        %s487 = smul.addr %s486, 12
        %s488 = smul.addr %s487, 8
        %s489 = scalar_lea.vmem %s4, %s488
        %p490 = scmp.lt.s32.totalorder %s30, 1
        %s491 = scalar_select %p490, %s30, 1
        %s492 = scalar_lea.vmem %s5, %s491
        %p493 = scmp.lt.s32.totalorder %s30, 1
        %s494 = scalar_select %p493, %s30, 1
        %s495 = smul.addr %s494, 4
        %s496 = smul.addr %s495, 8
        %s497 = scalar_lea.vmem %s6, %s496
        %p498 = scmp.lt.s32.totalorder %s30, 1
        %s499 = scalar_select %p498, %s30, 1
        %s500 = smul.addr %s499, 16
        %s501 = smul.addr %s500, 8
        %s502 = scalar_lea.vmem %s7, %s501
        %p503 = scmp.lt.s32.totalorder %s30, 1
        %s504 = scalar_select %p503, %s30, 1
        %s505 = scalar_lea.vmem %s8, %s504
        %p506 = scmp.lt.s32.totalorder %s30, 1
        %s507 = scalar_select %p506, %s30, 1
        %s508 = smul.addr %s507, 4
        %s509 = smul.addr %s508, 8
        %s510 = scalar_lea.vmem %s9, %s509
        %p511 = scmp.lt.s32.totalorder %s30, 1
        %s512 = scalar_select %p511, %s30, 1
        %s513 = smul.addr %s512, 8
        %s514 = scalar_lea.vmem %s10, %s513
        %p515 = scmp.eq.s32.totalorder %s30, 0
        // Predicated region
        $region65: #{tpu_custom_call.1} parent=63 // pred_check
          %p516 = pneg %p515
        $region66: #{tpu_custom_call.1} parent=63 // pred_check_branch
          %518 = sbr.rel (%p516) target = $region68
        $region67: #{tpu_custom_call.1} parent=63 // pred_region
          %v519 = vld [vmem:[%s484] sm:$0x1]
          %v520 = vperm.slane %v519, 0
          %v521 = vlaneseq
          %v522 = vshrl.u32 %v521, 7
          %524 = vset.pattern.permute.xlu0 %v522
          %525 = vperm.xlu0 %524, %v520
          %v526 = vpop.permute.xlu0 %525
          %v527 = vld [vmem:[%s1] sm:$0x1]
          %v529 = vperm.slane %v527, 0
          %v531 = vmul.f32 %v526, %v529
          %v532 = vld [vmem:[%s2] sm:$0x1]
          %v534 = vperm.slane %v532, 0
          %v536 = vadd.f32 %v531, %v534
          %v537 = vld [vmem:[%s3] sm:$0xff]
          %v538 = vadd.f32 %v536, %v537
          %vm539 = vcmask 261120
          %540 = vst.msk [vmem:[#allocation2] sm:$0xff] %vm539, %v538
        $region68: #{tpu_custom_call.1} parent=63 // pred_fallthru
          _
        %v541 = vld [vmem:[#allocation2] sm:$0xff]
        %v542 = vld [vmem:[%s514] sm:$0x3f]
        %v543 = vld [vmem:[%s489] sm:$0xff]
        %v544 = vld [vmem:[%s489 + $0x8] sm:$0xff]
        %v545 = vld [vmem:[%s489 + $0x10] sm:$0xff]
        %v546 = vld [vmem:[%s489 + $0x18] sm:$0xff]
        %v547 = vld [vmem:[%s489 + $0x20] sm:$0xff]
        %v548 = vld [vmem:[%s489 + $0x28] sm:$0xff]
        %v549 = vld [vmem:[%s489 + $0x30] sm:$0xff]
        %v550 = vld [vmem:[%s489 + $0x38] sm:$0xff]
        %v551 = vld [vmem:[%s489 + $0x40] sm:$0xff]
        %v552 = vld [vmem:[%s489 + $0x48] sm:$0xff]
        %v553 = vld [vmem:[%s489 + $0x50] sm:$0xff]
        %v554 = vld [vmem:[%s489 + $0x58] sm:$0xff]
        %v555 = vld [vmem:[%s492] sm:$0x1]
        %v557 = vperm.slane %v555, 0
        %vm559 = vcmask 261120
        %v561 = vsel %vm559, %v541, 0
        %v564 = vsel %vm559, %v543, 0
        %v567 = vsel %vm559, %v544, 0
        %v570 = vsel %vm559, %v545, 0
        %v573 = vsel %vm559, %v546, 0
        %v576 = vsel %vm559, %v547, 0
        %v579 = vsel %vm559, %v548, 0
        %v582 = vsel %vm559, %v549, 0
        %v585 = vsel %vm559, %v550, 0
        %v588 = vsel %vm559, %v551, 0
        %v591 = vsel %vm559, %v552, 0
        %v594 = vsel %vm559, %v553, 0
        %v597 = vsel %vm559, %v554, 0
        %599 = vmatpush.xpose.msra.mxu0 0.0
        %600 = vmatpush.xpose.msra.mxu0 0.0
        %601 = vmatpush.xpose.msra.mxu0 0.0
        %602 = vmatpush.xpose.msra.mxu0 0.0
        %603 = vmatpush.xpose.msra.mxu0 %v597
        %604 = vmatpush.xpose.msra.mxu0 %v594
        %605 = vmatpush.xpose.msra.mxu0 %v591
        %606 = vmatpush.xpose.msra.mxu0 %v588
        %607 = vmatpush.xpose.msra.mxu0 %v585
        %608 = vmatpush.xpose.msra.mxu0 %v582
        %609 = vmatpush.xpose.msra.mxu0 %v579
        %610 = vmatpush.xpose.msra.mxu0 %v576
        %611 = vmatpush.xpose.msra.mxu0 %v573
        %612 = vmatpush.xpose.msra.mxu0 %v570
        %613 = vmatpush.xpose.msra.mxu0 %v567
        %614 = vmatpush.xpose.msra.mxu0 %v564
        %615 = vmatmul.f32.gmra.mxu0 %v561
        %v616 = vpop.f32.mrf.mxu0
        %v617 = vadd.f32 %v557, %v616
        %618 = vdwg.mxu0
        %620 = vrot.lane.b32.xlu0 %v617, 96
        %v621 = vpop.permute.xlu0 %620
        %vm622 = vcmask 64512
        %v623 = vsel %vm622, %v617, 0
        %v625 = vsel %vm622, %v621, 0
        %627 = vmatpush.xpose.msra.mxu0 0.0
        %628 = vmatpush.xpose.msra.mxu0 0.0
        %629 = vmatpush.xpose.msra.mxu0 0.0
        %630 = vmatpush.xpose.msra.mxu0 0.0
        %631 = vmatpush.xpose.msra.mxu0 0.0
        %632 = vmatpush.xpose.msra.mxu0 0.0
        %633 = vmatpush.xpose.msra.mxu0 0.0
        %634 = vmatpush.xpose.msra.mxu0 0.0
        %635 = vmatpush.xpose.msra.mxu0 0.0
        %636 = vmatpush.xpose.msra.mxu0 0.0
        %637 = vmatpush.xpose.msra.mxu0 0.0
        %638 = vmatpush.xpose.msra.mxu0 0.0
        %639 = vmatpush.xpose.msra.mxu0 0.0
        %640 = vmatpush.xpose.msra.mxu0 0.0
        %641 = vmatpush.xpose.msra.mxu0 0.0
        %642 = vmatpush.xpose.msra.mxu0 %v625
        %643 = vmatmul.f32.gmra.mxu0 %v623
        %v644 = vpop.f32.mrf.mxu0
        %v645 = vadd.f32 0.0, %v644
        %646 = vdwg.mxu0
        %v647 = vmul.f32 %v645, 0.35355338
        %v648 = vsel %vm622, %v647, -inf
        %649 = vmax.xlane.f32.xlu0 %v648
        %v650 = vpop.xlane.xlu0 %649
        %v651 = vsub.f32 %v647, %v650
        %v652 = vmul.f32 %v651, 1.442695
        %v653 = vpow.pop %v652
        %v654 = vsel %vm622, %v653, 0.0
        %655 = vadd.xlane.f32.xlu0 %v654
        %v656 = vpop.xlane.xlu0 %655
        %v657 = vrcp.pop %v656
        %v658 = vmul.f32 %v656, %v657
        %v659 = vsub.f32 1.0, %v658
        %v660 = vmul.f32 %v657, %v659
        %v661 = vadd.f32 %v657, %v660
        %vm662 = vweird.f32 %v656
        %vm663 = vweird.f32 %v657
        %vm664 = vmor %vm662, %vm663
        %v665 = vsel %vm664, %v657, %v661
        %v666 = vand.u32 2147483647, %v656
        %vm667 = vcmp.eq.f32.partialorder %v666, 8.507059e+37
        %v668 = vand.u32 %v656, 2147483648
        %v669 = vor.u32 1.1754944e-38, %v668
        %v670 = vsel %vm667, %v669, %v665
        %v671 = vmul.f32 %v653, %v670
        %672 = vrot.lane.b32.xlu0 %v617, 64
        %v673 = vpop.permute.xlu0 %672
        %v676 = vsel %vm622, %v671, 0
        %678 = vmatpush.msra.mxu0 0.0
        %679 = vmatpush.msra.mxu0 0.0
        %680 = vmatpush.msra.mxu0 0.0
        %681 = vmatpush.msra.mxu0 0.0
        %682 = vmatpush.msra.mxu0 0.0
        %683 = vmatpush.msra.mxu0 0.0
        %684 = vmatpush.msra.mxu0 0.0
        %685 = vmatpush.msra.mxu0 0.0
        %686 = vmatpush.msra.mxu0 0.0
        %687 = vmatpush.msra.mxu0 0.0
        %688 = vmatpush.msra.mxu0 0.0
        %689 = vmatpush.msra.mxu0 0.0
        %690 = vmatpush.msra.mxu0 0.0
        %691 = vmatpush.msra.mxu0 0.0
        %692 = vmatpush.msra.mxu0 0.0
        %693 = vmatpush.msra.mxu0 %v673
        %694 = vmatmul.f32.gmra.mxu0 %v676
        %v695 = vpop.f32.mrf.mxu0
        %v696 = vadd.f32 0.0, %v695
        %697 = vdwg.mxu0
        %698 = vrot.lane.b32.xlu0 %v617, 120
        %v699 = vpop.permute.xlu0 %698
        %700 = vrot.lane.b32.xlu0 %v617, 88
        %v701 = vpop.permute.xlu0 %700
        %v702 = vsel %vm622, %v699, 0
        %v704 = vsel %vm622, %v701, 0
        %706 = vmatpush.xpose.msra.mxu0 0.0
        %707 = vmatpush.xpose.msra.mxu0 0.0
        %708 = vmatpush.xpose.msra.mxu0 0.0
        %709 = vmatpush.xpose.msra.mxu0 0.0
        %710 = vmatpush.xpose.msra.mxu0 0.0
        %711 = vmatpush.xpose.msra.mxu0 0.0
        %712 = vmatpush.xpose.msra.mxu0 0.0
        %713 = vmatpush.xpose.msra.mxu0 0.0
        %714 = vmatpush.xpose.msra.mxu0 0.0
        %715 = vmatpush.xpose.msra.mxu0 0.0
        %716 = vmatpush.xpose.msra.mxu0 0.0
        %717 = vmatpush.xpose.msra.mxu0 0.0
        %718 = vmatpush.xpose.msra.mxu0 0.0
        %719 = vmatpush.xpose.msra.mxu0 0.0
        %720 = vmatpush.xpose.msra.mxu0 0.0
        %721 = vmatpush.xpose.msra.mxu0 %v704
        %722 = vmatmul.f32.gmra.mxu0 %v702
        %v723 = vpop.f32.mrf.mxu0
        %v724 = vadd.f32 0.0, %v723
        %725 = vdwg.mxu0
        %v726 = vmul.f32 %v724, 0.35355338
        %v727 = vsel %vm622, %v726, -inf
        %728 = vmax.xlane.f32.xlu0 %v727
        %v729 = vpop.xlane.xlu0 %728
        %v730 = vsub.f32 %v726, %v729
        %v731 = vmul.f32 %v730, 1.442695
        %v732 = vpow.pop %v731
        %v733 = vsel %vm622, %v732, 0.0
        %734 = vadd.xlane.f32.xlu0 %v733
        %v735 = vpop.xlane.xlu0 %734
        %v736 = vrcp.pop %v735
        %v737 = vmul.f32 %v735, %v736
        %v738 = vsub.f32 1.0, %v737
        %v739 = vmul.f32 %v736, %v738
        %v740 = vadd.f32 %v736, %v739
        %vm741 = vweird.f32 %v735
        %vm742 = vweird.f32 %v736
        %vm743 = vmor %vm741, %vm742
        %v744 = vsel %vm743, %v736, %v740
        %v745 = vand.u32 2147483647, %v735
        %vm746 = vcmp.eq.f32.partialorder %v745, 8.507059e+37
        %v747 = vand.u32 %v735, 2147483648
        %v748 = vor.u32 1.1754944e-38, %v747
        %v749 = vsel %vm746, %v748, %v744
        %v750 = vmul.f32 %v732, %v749
        %751 = vrot.lane.b32.xlu0 %v617, 56
        %v752 = vpop.permute.xlu0 %751
        %v755 = vsel %vm622, %v750, 0
        %757 = vmatpush.msra.mxu0 0.0
        %758 = vmatpush.msra.mxu0 0.0
        %759 = vmatpush.msra.mxu0 0.0
        %760 = vmatpush.msra.mxu0 0.0
        %761 = vmatpush.msra.mxu0 0.0
        %762 = vmatpush.msra.mxu0 0.0
        %763 = vmatpush.msra.mxu0 0.0
        %764 = vmatpush.msra.mxu0 0.0
        %765 = vmatpush.msra.mxu0 0.0
        %766 = vmatpush.msra.mxu0 0.0
        %767 = vmatpush.msra.mxu0 0.0
        %768 = vmatpush.msra.mxu0 0.0
        %769 = vmatpush.msra.mxu0 0.0
        %770 = vmatpush.msra.mxu0 0.0
        %771 = vmatpush.msra.mxu0 0.0
        %772 = vmatpush.msra.mxu0 %v752
        %773 = vmatmul.f32.gmra.mxu0 %v755
        %v774 = vpop.f32.mrf.mxu0
        %v775 = vadd.f32 0.0, %v774
        %776 = vdwg.mxu0
        %777 = vrot.lane.b32.xlu0 %v617, 112
        %v778 = vpop.permute.xlu0 %777
        %779 = vrot.lane.b32.xlu0 %v617, 80
        %v780 = vpop.permute.xlu0 %779
        %v781 = vsel %vm622, %v778, 0
        %v783 = vsel %vm622, %v780, 0
        %785 = vmatpush.xpose.msra.mxu0 0.0
        %786 = vmatpush.xpose.msra.mxu0 0.0
        %787 = vmatpush.xpose.msra.mxu0 0.0
        %788 = vmatpush.xpose.msra.mxu0 0.0
        %789 = vmatpush.xpose.msra.mxu0 0.0
        %790 = vmatpush.xpose.msra.mxu0 0.0
        %791 = vmatpush.xpose.msra.mxu0 0.0
        %792 = vmatpush.xpose.msra.mxu0 0.0
        %793 = vmatpush.xpose.msra.mxu0 0.0
        %794 = vmatpush.xpose.msra.mxu0 0.0
        %795 = vmatpush.xpose.msra.mxu0 0.0
        %796 = vmatpush.xpose.msra.mxu0 0.0
        %797 = vmatpush.xpose.msra.mxu0 0.0
        %798 = vmatpush.xpose.msra.mxu0 0.0
        %799 = vmatpush.xpose.msra.mxu0 0.0
        %800 = vmatpush.xpose.msra.mxu0 %v783
        %801 = vmatmul.f32.gmra.mxu0 %v781
        %v802 = vpop.f32.mrf.mxu0
        %v803 = vadd.f32 0.0, %v802
        %804 = vdwg.mxu0
        %v805 = vmul.f32 %v803, 0.35355338
        %v806 = vsel %vm622, %v805, -inf
        %807 = vmax.xlane.f32.xlu0 %v806
        %v808 = vpop.xlane.xlu0 %807
        %v809 = vsub.f32 %v805, %v808
        %v810 = vmul.f32 %v809, 1.442695
        %v811 = vpow.pop %v810
        %v812 = vsel %vm622, %v811, 0.0
        %813 = vadd.xlane.f32.xlu0 %v812
        %v814 = vpop.xlane.xlu0 %813
        %v815 = vrcp.pop %v814
        %v816 = vmul.f32 %v814, %v815
        %v817 = vsub.f32 1.0, %v816
        %v818 = vmul.f32 %v815, %v817
        %v819 = vadd.f32 %v815, %v818
        %vm820 = vweird.f32 %v814
        %vm821 = vweird.f32 %v815
        %vm822 = vmor %vm820, %vm821
        %v823 = vsel %vm822, %v815, %v819
        %v824 = vand.u32 2147483647, %v814
        %vm825 = vcmp.eq.f32.partialorder %v824, 8.507059e+37
        %v826 = vand.u32 %v814, 2147483648
        %v827 = vor.u32 1.1754944e-38, %v826
        %v828 = vsel %vm825, %v827, %v823
        %v829 = vmul.f32 %v811, %v828
        %830 = vrot.lane.b32.xlu0 %v617, 48
        %v831 = vpop.permute.xlu0 %830
        %v834 = vsel %vm622, %v829, 0
        %836 = vmatpush.msra.mxu0 0.0
        %837 = vmatpush.msra.mxu0 0.0
        %838 = vmatpush.msra.mxu0 0.0
        %839 = vmatpush.msra.mxu0 0.0
        %840 = vmatpush.msra.mxu0 0.0
        %841 = vmatpush.msra.mxu0 0.0
        %842 = vmatpush.msra.mxu0 0.0
        %843 = vmatpush.msra.mxu0 0.0
        %844 = vmatpush.msra.mxu0 0.0
        %845 = vmatpush.msra.mxu0 0.0
        %846 = vmatpush.msra.mxu0 0.0
        %847 = vmatpush.msra.mxu0 0.0
        %848 = vmatpush.msra.mxu0 0.0
        %849 = vmatpush.msra.mxu0 0.0
        %850 = vmatpush.msra.mxu0 0.0
        %851 = vmatpush.msra.mxu0 %v831
        %852 = vmatmul.f32.gmra.mxu0 %v834
        %v853 = vpop.f32.mrf.mxu0
        %v854 = vadd.f32 0.0, %v853
        %855 = vdwg.mxu0
        %856 = vrot.lane.b32.xlu0 %v617, 104
        %v857 = vpop.permute.xlu0 %856
        %858 = vrot.lane.b32.xlu0 %v617, 72
        %v859 = vpop.permute.xlu0 %858
        %v860 = vsel %vm622, %v857, 0
        %v862 = vsel %vm622, %v859, 0
        %864 = vmatpush.xpose.msra.mxu0 0.0
        %865 = vmatpush.xpose.msra.mxu0 0.0
        %866 = vmatpush.xpose.msra.mxu0 0.0
        %867 = vmatpush.xpose.msra.mxu0 0.0
        %868 = vmatpush.xpose.msra.mxu0 0.0
        %869 = vmatpush.xpose.msra.mxu0 0.0
        %870 = vmatpush.xpose.msra.mxu0 0.0
        %871 = vmatpush.xpose.msra.mxu0 0.0
        %872 = vmatpush.xpose.msra.mxu0 0.0
        %873 = vmatpush.xpose.msra.mxu0 0.0
        %874 = vmatpush.xpose.msra.mxu0 0.0
        %875 = vmatpush.xpose.msra.mxu0 0.0
        %876 = vmatpush.xpose.msra.mxu0 0.0
        %877 = vmatpush.xpose.msra.mxu0 0.0
        %878 = vmatpush.xpose.msra.mxu0 0.0
        %879 = vmatpush.xpose.msra.mxu0 %v862
        %880 = vmatmul.f32.gmra.mxu0 %v860
        %v881 = vpop.f32.mrf.mxu0
        %v882 = vadd.f32 0.0, %v881
        %883 = vdwg.mxu0
        %v884 = vmul.f32 %v882, 0.35355338
        %v885 = vsel %vm622, %v884, -inf
        %886 = vmax.xlane.f32.xlu0 %v885
        %v887 = vpop.xlane.xlu0 %886
        %v888 = vsub.f32 %v884, %v887
        %v889 = vmul.f32 %v888, 1.442695
        %v890 = vpow.pop %v889
        %v891 = vsel %vm622, %v890, 0.0
        %892 = vadd.xlane.f32.xlu0 %v891
        %v893 = vpop.xlane.xlu0 %892
        %v894 = vrcp.pop %v893
        %v895 = vmul.f32 %v893, %v894
        %v896 = vsub.f32 1.0, %v895
        %v897 = vmul.f32 %v894, %v896
        %v898 = vadd.f32 %v894, %v897
        %vm899 = vweird.f32 %v893
        %vm900 = vweird.f32 %v894
        %vm901 = vmor %vm899, %vm900
        %v902 = vsel %vm901, %v894, %v898
        %v903 = vand.u32 2147483647, %v893
        %vm904 = vcmp.eq.f32.partialorder %v903, 8.507059e+37
        %v905 = vand.u32 %v893, 2147483648
        %v906 = vor.u32 1.1754944e-38, %v905
        %v907 = vsel %vm904, %v906, %v902
        %v908 = vmul.f32 %v890, %v907
        %909 = vrot.lane.b32.xlu0 %v617, 40
        %v910 = vpop.permute.xlu0 %909
        %v913 = vsel %vm622, %v908, 0
        %915 = vmatpush.msra.mxu0 0.0
        %916 = vmatpush.msra.mxu0 0.0
        %917 = vmatpush.msra.mxu0 0.0
        %918 = vmatpush.msra.mxu0 0.0
        %919 = vmatpush.msra.mxu0 0.0
        %920 = vmatpush.msra.mxu0 0.0
        %921 = vmatpush.msra.mxu0 0.0
        %922 = vmatpush.msra.mxu0 0.0
        %923 = vmatpush.msra.mxu0 0.0
        %924 = vmatpush.msra.mxu0 0.0
        %925 = vmatpush.msra.mxu0 0.0
        %926 = vmatpush.msra.mxu0 0.0
        %927 = vmatpush.msra.mxu0 0.0
        %928 = vmatpush.msra.mxu0 0.0
        %929 = vmatpush.msra.mxu0 0.0
        %930 = vmatpush.msra.mxu0 %v910
        %931 = vmatmul.f32.gmra.mxu0 %v913
        %v932 = vpop.f32.mrf.mxu0
        %v933 = vadd.f32 0.0, %v932
        %934 = vdwg.mxu0
        %936 = vrot.lane.b32.xlu0 %v775, 8
        %v937 = vpop.permute.xlu0 %936
        %940 = vrot.lane.b32.xlu0 %v854, 16
        %v941 = vpop.permute.xlu0 %940
        %944 = vrot.lane.b32.xlu0 %v933, 24
        %v945 = vpop.permute.xlu0 %944
        %v947 = vsel %vm622, %v696, %v937
        %vm948 = vcmask 130048
        %v949 = vsel %vm948, %v947, %v941
        %vm950 = vcmask 195584
        %v951 = vsel %vm950, %v949, %v945
        %v952 = vld [vmem:[%s497] sm:$0xff]
        %v953 = vld [vmem:[%s497 + $0x8] sm:$0xff]
        %v954 = vld [vmem:[%s497 + $0x10] sm:$0xff]
        %v955 = vld [vmem:[%s497 + $0x18] sm:$0xff]
        %v956 = vperm.slane %v542, 0
        %v958 = vsel %vm559, %v951, 0
        %v961 = vsel %vm559, %v952, 0
        %v964 = vsel %vm559, %v953, 0
        %v967 = vsel %vm559, %v954, 0
        %v970 = vsel %vm559, %v955, 0
        %972 = vmatpush.xpose.msra.mxu0 0.0
        %973 = vmatpush.xpose.msra.mxu0 0.0
        %974 = vmatpush.xpose.msra.mxu0 0.0
        %975 = vmatpush.xpose.msra.mxu0 0.0
        %976 = vmatpush.xpose.msra.mxu0 0.0
        %977 = vmatpush.xpose.msra.mxu0 0.0
        %978 = vmatpush.xpose.msra.mxu0 0.0
        %979 = vmatpush.xpose.msra.mxu0 0.0
        %980 = vmatpush.xpose.msra.mxu0 0.0
        %981 = vmatpush.xpose.msra.mxu0 0.0
        %982 = vmatpush.xpose.msra.mxu0 0.0
        %983 = vmatpush.xpose.msra.mxu0 0.0
        %984 = vmatpush.xpose.msra.mxu0 %v970
        %985 = vmatpush.xpose.msra.mxu0 %v967
        %986 = vmatpush.xpose.msra.mxu0 %v964
        %987 = vmatpush.xpose.msra.mxu0 %v961
        %988 = vmatmul.f32.gmra.mxu0 %v958
        %v989 = vpop.f32.mrf.mxu0
        %v990 = vadd.f32 %v956, %v989
        %991 = vdwg.mxu0
        %v992 = vadd.f32 %v541, %v990
        %v993 = vsel %vm559, %v992, 0.0
        %994 = vadd.xlane.f32.xlu0 %v993
        %v995 = vpop.xlane.xlu0 %994
        %v996 = vrcp.pop 32.0
        %v997 = vmul.f32 32.0, %v996
        %v998 = vsub.f32 1.0, %v997
        %v999 = vmul.f32 %v996, %v998
        %v1000 = vadd.f32 %v996, %v999
        %vm1001 = vweird.f32 %v996
        %v1002 = vsel %vm1001, %v996, %v1000
        %v1003 = vmul.f32 %v995, %v1002
        %v1004 = vsub.f32 %v992, %v1003
        %v1005 = vmul.f32 %v1004, %v1004
        %v1006 = vsel %vm559, %v1005, 0.0
        %1007 = vadd.xlane.f32.xlu0 %v1006
        %v1008 = vpop.xlane.xlu0 %1007
        %v1009 = vmul.f32 %v1008, %v1002
        %v1010 = vadd.f32 %v1009, 1e-05
        %v1011 = vrsqrt.pop %v1010
        %v1012 = vmul.f32 %v1011, %v1010
        %v1013 = vmul.f32 %v1012, %v1011
        %v1014 = vmul.f32 0.5, %v1013
        %v1015 = vsub.f32 1.5, %v1014
        %v1016 = vmul.f32 %v1011, %v1015
        %vm1017 = vweird.f32 %v1010
        %vm1018 = vweird.f32 %v1011
        %vm1019 = vmor %vm1017, %vm1018
        %v1020 = vsel %vm1019, %v1011, %v1016
        %v1021 = vmul.f32 %v1004, %v1020
        %v1022 = vperm.slane %v542, 2
        %v1023 = vmul.f32 %v1021, %v1022
        %v1024 = vperm.slane %v542, 3
        %v1025 = vadd.f32 %v1023, %v1024
        %v1026 = vld [vmem:[%s502] sm:$0xff]
        %v1027 = vld [vmem:[%s502 + $0x8] sm:$0xff]
        %v1028 = vld [vmem:[%s502 + $0x10] sm:$0xff]
        %v1029 = vld [vmem:[%s502 + $0x18] sm:$0xff]
        %v1030 = vld [vmem:[%s502 + $0x20] sm:$0xff]
        %v1031 = vld [vmem:[%s502 + $0x28] sm:$0xff]
        %v1032 = vld [vmem:[%s502 + $0x30] sm:$0xff]
        %v1033 = vld [vmem:[%s502 + $0x38] sm:$0xff]
        %v1034 = vld [vmem:[%s502 + $0x40] sm:$0xff]
        %v1035 = vld [vmem:[%s502 + $0x48] sm:$0xff]
        %v1036 = vld [vmem:[%s502 + $0x50] sm:$0xff]
        %v1037 = vld [vmem:[%s502 + $0x58] sm:$0xff]
        %v1038 = vld [vmem:[%s502 + $0x60] sm:$0xff]
        %v1039 = vld [vmem:[%s502 + $0x68] sm:$0xff]
        %v1040 = vld [vmem:[%s502 + $0x70] sm:$0xff]
        %v1041 = vld [vmem:[%s502 + $0x78] sm:$0xff]
        %v1042 = vld [vmem:[%s505] sm:$0x1]
        %v1044 = vperm.slane %v1042, 0
        %v1047 = vsel %vm559, %v1025, 0
        %v1050 = vsel %vm559, %v1026, 0
        %v1053 = vsel %vm559, %v1027, 0
        %v1056 = vsel %vm559, %v1028, 0
        %v1059 = vsel %vm559, %v1029, 0
        %v1062 = vsel %vm559, %v1030, 0
        %v1065 = vsel %vm559, %v1031, 0
        %v1068 = vsel %vm559, %v1032, 0
        %v1071 = vsel %vm559, %v1033, 0
        %v1074 = vsel %vm559, %v1034, 0
        %v1077 = vsel %vm559, %v1035, 0
        %v1080 = vsel %vm559, %v1036, 0
        %v1083 = vsel %vm559, %v1037, 0
        %v1086 = vsel %vm559, %v1038, 0
        %v1089 = vsel %vm559, %v1039, 0
        %v1092 = vsel %vm559, %v1040, 0
        %v1095 = vsel %vm559, %v1041, 0
        %1097 = vmatpush.xpose.msra.mxu0 %v1095
        %1098 = vmatpush.xpose.msra.mxu0 %v1092
        %1099 = vmatpush.xpose.msra.mxu0 %v1089
        %1100 = vmatpush.xpose.msra.mxu0 %v1086
        %1101 = vmatpush.xpose.msra.mxu0 %v1083
        %1102 = vmatpush.xpose.msra.mxu0 %v1080
        %1103 = vmatpush.xpose.msra.mxu0 %v1077
        %1104 = vmatpush.xpose.msra.mxu0 %v1074
        %1105 = vmatpush.xpose.msra.mxu0 %v1071
        %1106 = vmatpush.xpose.msra.mxu0 %v1068
        %1107 = vmatpush.xpose.msra.mxu0 %v1065
        %1108 = vmatpush.xpose.msra.mxu0 %v1062
        %1109 = vmatpush.xpose.msra.mxu0 %v1059
        %1110 = vmatpush.xpose.msra.mxu0 %v1056
        %1111 = vmatpush.xpose.msra.mxu0 %v1053
        %1112 = vmatpush.xpose.msra.mxu0 %v1050
        %1113 = vmatmul.f32.gmra.mxu0 %v1047
        %v1114 = vpop.f32.mrf.mxu0
        %v1115 = vadd.f32 %v1044, %v1114
        %1116 = vdwg.mxu0
        %v1117 = vmax.f32 %v1115, 0.0
        %v1118 = vld [vmem:[%s510] sm:$0xff]
        %v1119 = vld [vmem:[%s510 + $0x8] sm:$0xff]
        %v1120 = vld [vmem:[%s510 + $0x10] sm:$0xff]
        %v1121 = vld [vmem:[%s510 + $0x18] sm:$0xff]
        %v1122 = vperm.slane %v542, 1
        %1123 = vmatpush.xpose.msra.mxu0 0.0
        %1124 = vmatpush.xpose.msra.mxu0 0.0
        %1125 = vmatpush.xpose.msra.mxu0 0.0
        %1126 = vmatpush.xpose.msra.mxu0 0.0
        %1127 = vmatpush.xpose.msra.mxu0 0.0
        %1128 = vmatpush.xpose.msra.mxu0 0.0
        %1129 = vmatpush.xpose.msra.mxu0 0.0
        %1130 = vmatpush.xpose.msra.mxu0 0.0
        %1131 = vmatpush.xpose.msra.mxu0 0.0
        %1132 = vmatpush.xpose.msra.mxu0 0.0
        %1133 = vmatpush.xpose.msra.mxu0 0.0
        %1134 = vmatpush.xpose.msra.mxu0 0.0
        %1135 = vmatpush.xpose.msra.mxu0 %v1121
        %1136 = vmatpush.xpose.msra.mxu0 %v1120
        %1137 = vmatpush.xpose.msra.mxu0 %v1119
        %1138 = vmatpush.xpose.msra.mxu0 %v1118
        %1139 = vmatmul.f32.gmra.mxu0 %v1117
        %v1140 = vpop.f32.mrf.mxu0
        %v1141 = vadd.f32 %v1122, %v1140
        %1142 = vdwg.mxu0
        %v1143 = vadd.f32 %v1025, %v1141
        %v1144 = vsel %vm559, %v1143, 0.0
        %1145 = vadd.xlane.f32.xlu0 %v1144
        %v1146 = vpop.xlane.xlu0 %1145
        %v1147 = vmul.f32 %v1146, %v1002
        %v1148 = vsub.f32 %v1143, %v1147
        %v1149 = vmul.f32 %v1148, %v1148
        %v1150 = vsel %vm559, %v1149, 0.0
        %1151 = vadd.xlane.f32.xlu0 %v1150
        %v1152 = vpop.xlane.xlu0 %1151
        %v1153 = vmul.f32 %v1152, %v1002
        %v1154 = vadd.f32 %v1153, 1e-05
        %v1155 = vrsqrt.pop %v1154
        %v1156 = vmul.f32 %v1155, %v1154
        %v1157 = vmul.f32 %v1156, %v1155
        %v1158 = vmul.f32 0.5, %v1157
        %v1159 = vsub.f32 1.5, %v1158
        %v1160 = vmul.f32 %v1155, %v1159
        %vm1161 = vweird.f32 %v1154
        %vm1162 = vweird.f32 %v1155
        %vm1163 = vmor %vm1161, %vm1162
        %v1164 = vsel %vm1163, %v1155, %v1160
        %v1165 = vmul.f32 %v1148, %v1164
        %v1166 = vperm.slane %v542, 4
        %v1167 = vmul.f32 %v1165, %v1166
        %v1168 = vperm.slane %v542, 5
        %v1169 = vadd.f32 %v1167, %v1168
        %1170 = vst.msk [vmem:[#allocation2] sm:$0xff] %vm559, %v1169
        %p1171 = scmp.eq.s32.totalorder %s30, 1
        // Predicated region
        $region69: #{tpu_custom_call.1} parent=63 // pred_check
          %p1172 = pneg %p1171
        $region70: #{tpu_custom_call.1} parent=63 // pred_check_branch
          %1174 = sbr.rel (%p1172) target = $region72
        $region71: #{tpu_custom_call.1} parent=63 // pred_region
          %v1175 = vsel %vm559, %v1169, 0.0
          %v1176 = vrot.slane %v1175, 4
          %v1177 = vadd.f32 %v1175, %v1176
          %v1178 = vrot.slane %v1177, 2
          %v1179 = vadd.f32 %v1177, %v1178
          %v1180 = vrot.slane %v1179, 1
          %v1181 = vadd.f32 %v1179, %v1180
          %v1182 = vmul.f32 %v1181, 0.125
          %vm1183 = vcmask 253952
          %1184 = vst.msk [vmem:[%s481] sm:$0x1] %vm1183, %v1182
        $region72: #{tpu_custom_call.1} parent=63 // pred_fallthru
          _
        %s1185 = sand.u32 %s316, 1
        %s1186 = scalar_lea.sflag [#allocation4], %s1185
        %s1187 = sand.u32 %s316, 1
        %s1188 = scalar_lea.vmem [#allocation3], %s1187
        // Predicated region
        $region73: #{tpu_custom_call.1} parent=63 // pred_check
          %p1189 = pneg %p326
        $region74: #{tpu_custom_call.1} parent=63 // pred_check_branch
          %1191 = sbr.rel (%p1189) target = $region76
        $region75: #{tpu_custom_call.1} parent=63 // pred_region
          %1193 = vsyncadd %s1186, 0
          %s1194 = scalar_lea.hbm %s11, %s29
          %s1196 = sshll.u32 %s1188, 4
          %s1197 = int_to_ptr.vmem [resolvable:$true] %s1196
          %s1198 = sshll.u32 %s1194, 4
          %s1199 = int_to_ptr.hbm [resolvable:$true] %s1198
          %1201 = dma.vmem_to_hbm [thread:$0]  %s1197, 16, %s1199, %s1186
        $region76: #{tpu_custom_call.1} parent=63 // pred_fallthru
          _
      $region64: #{tpu_custom_call.1} parent=5 // pred_fallthru
        _
      %p1202 = scmp.le.s32.totalorder 2, %s20
      // Predicated region
      $region77: #{tpu_custom_call.1} parent=5 // pred_check
        %p1203 = pneg %p1202
      $region78: #{tpu_custom_call.1} parent=5 // pred_check_branch
        %1205 = sbr.rel (%p1203) target = $region80
      $region79: #{tpu_custom_call.1} parent=5 // pred_region
        %s1206 = ssub.s32 %s20, 2
        // Predicated region
        $region81: #{tpu_custom_call.1} parent=79 // pred_check
          %p1207 = pneg %p332
        $region82: #{tpu_custom_call.1} parent=79 // pred_check_branch
          %1209 = sbr.rel (%p1207) target = $region84
        $region83: #{tpu_custom_call.1} parent=79 // pred_region
          %s1210 = sand.u32 %s317, 1
          %s1211 = scalar_lea.sflag [#allocation4], %s1210
          %s1212 = sand.u32 %s317, 1
          %s1213 = scalar_lea.vmem [#allocation3], %s1212
          %1215 = dma.done %s1211, 16
        $region84: #{tpu_custom_call.1} parent=79 // pred_fallthru
          _
      $region80: #{tpu_custom_call.1} parent=5 // pred_fallthru
        _
    $region6: #{tpu_custom_call.1} parent=1 // loop_footer
      %s24 = sadd.s32 1, %s20
    $region7: #{tpu_custom_call.1} parent=1 // loop_footer_branch
      %19 = sbr.rel target = $region3
    $region8: #{tpu_custom_call.1} parent=1 // loop_exit
      _
    %1216 = vsyncpa [#allocation4], 1
    %s1217 = scalar_lea.sflag [#allocation4], 1
    %1218 = vsyncpa %s1217, 1

</llo_original>
